<compile_context>
chip_gen: v5e
topology: v5e:2x2
jax: 0.10.0
libtpu: 0.0.40
codegen_flags: <defaults>
</compile_context>

<pallas_src>
import jax
import jax.numpy as jnp
from jax.experimental import pallas as pl
from jax.experimental.pallas import tpu as pltpu

# ----------------------------- small config ---------------------------------
IMG_SIZE = 32
PATCH_SIZE = 8
INPUT_SIZE = IMG_SIZE // PATCH_SIZE          # 4
N_TOKENS = INPUT_SIZE * INPUT_SIZE           # 16  (== TABlock dim)
EMBED_DIM = 8
C4 = EMBED_DIM * 4                           # 32 (concat of 4 ViT layers)
C2 = EMBED_DIM // 2                          # 4
BATCH = 2
NUM_TAB = 2


# ----------------------------- in-kernel helpers -----------------------------
def _dot(a, b):
    return jnp.dot(a, b, preferred_element_type=jnp.float32)


def _dot_nt(a, b):
    """a @ b.T without materializing the transpose (contract last dims)."""
    return jax.lax.dot_general(a, b, (((1,), (1,)), ((), ())),
                               preferred_element_type=jnp.float32)


def _dot_tn(a, b):
    """a.T @ b without materializing the transpose (contract first dims)."""
    return jax.lax.dot_general(a, b, (((0,), (0,)), ((), ())),
                               preferred_element_type=jnp.float32)


def _scramble_sel(c, n):
    """Selection matrices implementing y = (attn@v).T.reshape(c, n) via matmuls.

    This is the PyTorch `(attn @ v).transpose(1, 2).reshape(B, C, N)` step,
    which intentionally scrambles channel/token order when C != N.  Only the
    C % N == 0 / N % C == 0 cases are needed at these dimensions.
    """
    row = jax.lax.broadcasted_iota(jnp.int32, (c, n), 0)
    col = jax.lax.broadcasted_iota(jnp.int32, (c, n), 1)
    if c == n:
        return "transpose", []
    if c % n == 0:
        m = c // n
        return "interleave_rows", [(row == m * col + t).astype(jnp.float32)
                                   for t in range(m)]
    assert n % c == 0, "TODO(synk): general C/N scramble not required here"
    m = n // c
    return "concat_lanes", [(col == m * row + t).astype(jnp.float32)
                            for t in range(m)]


def _apply_scramble(av, mode, sels, c, n):
    """Returns y with y[i, j] = av.T.flat[i*n + j]  (== av.T.reshape(c, n))."""
    if mode == "transpose":                  # c == n
        return av.T
    if mode == "interleave_rows":            # c == m * n
        m = c // n
        out = _dot_nt(sels[0], av[0:n, :])
        for t in range(1, m):
            out = out + _dot_nt(sels[t], av[t * n:(t + 1) * n, :])
        return out
    # "concat_lanes": n == m * c — each output row is m consecutive av.T rows.
    return jnp.concatenate([_dot_nt(s, av) for s in sels], axis=1)


def _tablock(x, wqkv_ref, bqkv_ref, base, n, norm_fact, mode, sels, c):
    """One TABlock on a single batch element, channel-major x: (C, N)."""
    # Three separate QKV matmuls (no lane-slicing of a fused 48-lane result).
    q = _dot(x, wqkv_ref[base + 0]) + bqkv_ref[base + 0]
    k = _dot(x, wqkv_ref[base + 1]) + bqkv_ref[base + 1]
    v = _dot(x, wqkv_ref[base + 2]) + bqkv_ref[base + 2]
    attn = _dot_nt(q, k) * norm_fact                      # (C, C)
    attn = attn - jnp.max(attn, axis=-1, keepdims=True)   # stable softmax
    p = jnp.exp(attn)
    attn = p * pl.reciprocal(jnp.sum(p, axis=-1, keepdims=True), approx=True)
    av = _dot(attn, v)                                    # (C, N)
    return x + _apply_scramble(av, mode, sels, c, n)      # residual; dropout=id


# ----------------------------- the fused kernel ------------------------------
def maniqa_kernel(feat_ref,
                  wqkv1_ref, bqkv1_ref, conv1_w_ref, conv1_b_ref,
                  wqkv2_ref, bqkv2_ref, conv2_w_ref, conv2_b_ref,
                  wh1_ref, bh1_ref, wh2_ref, bh2_ref,
                  o_ref):
    _, c4, n = feat_ref.shape
    embed = conv1_w_ref.shape[0]
    norm_fact = float(n) ** -0.5             # TABlock dim == N (= input_size^2)

    x = feat_ref[0]                           # (C4, N), already channel-major

    mode1, sels1 = _scramble_sel(c4, n)       # computed once per program
    mode2, sels2 = _scramble_sel(embed, n)

    for t in range(wqkv1_ref.shape[0] // 3):  # tablock1
        x = _tablock(x, wqkv1_ref, bqkv1_ref, 3 * t, n, norm_fact,
                     mode1, sels1, c4)

    # conv1 (1x1): (EMBED, C4) @ (C4, N) + bias
    x = _dot(conv1_w_ref[...], x) + conv1_b_ref[...]
    # TODO(synk): swintransformer1 definition not provided -> identity.

    for t in range(wqkv2_ref.shape[0] // 3):  # tablock2
        x = _tablock(x, wqkv2_ref, bqkv2_ref, 3 * t, n, norm_fact,
                     mode2, sels2, embed)

    # conv2 (1x1): (C2, EMBED) @ (EMBED, N) + bias
    x = _dot(conv2_w_ref[...], x) + conv2_b_ref[...]
    # TODO(synk): swintransformer2 definition not provided -> identity.

    # head: 'b c h w -> b (h w) c' fused into x.T @ Wh1 (no transpose op)
    h = jnp.maximum(_dot_tn(x, wh1_ref[...]) + bh1_ref[...], 0.0)   # (N, 2*C2)
    z = _dot(h, wh2_ref[...]) + bh2_ref[...]                        # (N, 2)
    f = jnp.maximum(z[:, 0:1], 0.0)           # fc_score output (ReLU)
    w = jax.nn.sigmoid(z[:, 1:2])             # fc_weight output (Sigmoid)

    num = jnp.sum(f * w, axis=0, keepdims=True)      # (1, 1)
    den = jnp.sum(w, axis=0, keepdims=True)          # (1, 1)
    score = num / den                                # exact divide (model output)
    o_ref[...] = jnp.broadcast_to(score, o_ref.shape)  # full (1,8,128) tile store


# ----------------------------- wrapper ---------------------------------------
def maniqa_forward(feat, params):
    """feat: (B, N, 4*embed_dim) — output of extract_feature(vit(x))."""
    batch, n, c4 = feat.shape
    # 'b (h w) c -> b c (h w)' hoisted out of the kernel (free XLA layout op).
    x0 = jnp.transpose(feat, (0, 2, 1))              # (B, C4, N)

    def resident(arr):
        # Full-array block whose index is constant across the batch grid axis:
        # the weight stays resident in VMEM (blocked specs pipeline via VMEM).
        nd = arr.ndim
        return pl.BlockSpec(arr.shape, lambda b, _nd=nd: (0,) * _nd)

    weight_order = ("wqkv1", "bqkv1", "conv1_w", "conv1_b",
                    "wqkv2", "bqkv2", "conv2_w", "conv2_b",
                    "wh1", "bh1", "wh2", "bh2")
    weights = [params[k] for k in weight_order]

    out = pl.pallas_call(
        maniqa_kernel,
        out_shape=jax.ShapeDtypeStruct((batch, 8, 128), jnp.float32),
        grid_spec=pltpu.PrefetchScalarGridSpec(
            num_scalar_prefetch=0,
            grid=(batch,),
            in_specs=[pl.BlockSpec((1, c4, n), lambda b: (b, 0, 0))]
                     + [resident(w) for w in weights],
            out_specs=pl.BlockSpec((1, 8, 128), lambda b: (b, 0, 0)),
        ),
        compiler_params=pltpu.CompilerParams(
            dimension_semantics=("parallel",)),   # both TCs on v7x; harmless on v5e/v6e
    )(x0, *weights)
    return out[:, 0, 0]                           # (B,)


# ----------------------------- param init -----------------------------------
def _linear(key, fan_in, fan_out, scale=0.05):
    k1, k2 = jax.random.split(key)
    w = scale * jax.random.normal(k1, (fan_in, fan_out), jnp.float32)
    b = scale * jax.random.normal(k2, (fan_out,), jnp.float32)
    return w, b


def init_params(key):
    keys = jax.random.split(key, 32)
    ki = iter(keys)

    def tab_group():
        ws, bs = [], []
        for _ in range(NUM_TAB):
            for _ in range(3):                       # q, k, v
                w, b = _linear(next(ki), N_TOKENS, N_TOKENS)
                ws.append(w)
                bs.append(b.reshape(1, -1))
        # (NUM_TAB*3, N, N), (NUM_TAB*3, 1, N)
        return jnp.stack(ws), jnp.stack(bs)

    params = {}
    params["wqkv1"], params["bqkv1"] = tab_group()
    params["wqkv2"], params["bqkv2"] = tab_group()

    w1, b1 = _linear(next(ki), C4, EMBED_DIM)
    params["conv1_w"] = w1.T                         # (Cout, Cin)
    params["conv1_b"] = b1.reshape(-1, 1)            # (Cout, 1)
    w2, b2 = _linear(next(ki), EMBED_DIM, C2)
    params["conv2_w"] = w2.T
    params["conv2_b"] = b2.reshape(-1, 1)

    ws1, bs1 = _linear(next(ki), C2, C2)
    ws2, bs2 = _linear(next(ki), C2, 1)
    ww1, bw1 = _linear(next(ki), C2, C2)
    ww2, bw2 = _linear(next(ki), C2, 1)
    # fused score|weight head: first layers side-by-side, second block-diagonal
    params["wh1"] = jnp.concatenate([ws1, ww1], axis=1)        # (C2, 2*C2)
    params["bh1"] = jnp.concatenate([bs1, bw1]).reshape(1, -1)
    wh2 = jnp.zeros((2 * C2, 2), jnp.float32)
    wh2 = wh2.at[:C2, 0:1].set(ws2).at[C2:, 1:2].set(ww2)
    params["wh2"] = wh2                                        # (2*C2, 2)
    params["bh2"] = jnp.concatenate([bs2, bw2]).reshape(1, -1)
    return params


# ----------------------------- main ------------------------------------------
if __name__ == "__main__":
    key = jax.random.PRNGKey(0)
    k_feat, k_params = jax.random.split(key)
    # Stand-in for extract_feature(vit(image)): (B, N, 4*embed_dim)
    feat = jax.random.normal(k_feat, (BATCH, N_TOKENS, C4), jnp.float32)
    params = init_params(k_params)

    score = jax.jit(maniqa_forward)(feat, params)
    score = jax.block_until_ready(score)
    assert score.shape == (BATCH,)
    assert bool(jnp.all(jnp.isfinite(score)))
    print("KERNEL_OK")
</pallas_src>

<mosaic_0001>
module attributes {stable_mosaic.version = 11 : i64} {
  func.func @maniqa_kernel(%arg0: i32, %arg1: memref<1x32x16xf32, #tpu.memory_space<vmem>>, %arg2: memref<6x16x16xf32, #tpu.memory_space<vmem>>, %arg3: memref<6x1x16xf32, #tpu.memory_space<vmem>>, %arg4: memref<8x32xf32, #tpu.memory_space<vmem>>, %arg5: memref<8x1xf32, #tpu.memory_space<vmem>>, %arg6: memref<6x16x16xf32, #tpu.memory_space<vmem>>, %arg7: memref<6x1x16xf32, #tpu.memory_space<vmem>>, %arg8: memref<4x8xf32, #tpu.memory_space<vmem>>, %arg9: memref<4x1xf32, #tpu.memory_space<vmem>>, %arg10: memref<4x8xf32, #tpu.memory_space<vmem>>, %arg11: memref<1x8xf32, #tpu.memory_space<vmem>>, %arg12: memref<8x2xf32, #tpu.memory_space<vmem>>, %arg13: memref<1x2xf32, #tpu.memory_space<vmem>>, %arg14: memref<1x8x128xf32, #tpu.memory_space<vmem>>) attributes {dimension_semantics = [#tpu.dimension_semantics<parallel>], iteration_bounds = array<i64: 2>, scalar_prefetch = 0 : i64, scratch_operands = 0 : i64, tpu.core_type = #tpu.core_type<tc>, window_params = [{transform_indices = @transform_0, window_bounds = array<i64: 1, 32, 16>}, {pipeline_mode = #tpu.pipeline_mode<synchronous>, transform_indices = @transform_1, window_bounds = array<i64: 6, 16, 16>}, {pipeline_mode = #tpu.pipeline_mode<synchronous>, transform_indices = @transform_2, window_bounds = array<i64: 6, 1, 16>}, {pipeline_mode = #tpu.pipeline_mode<synchronous>, transform_indices = @transform_3, window_bounds = array<i64: 8, 32>}, {pipeline_mode = #tpu.pipeline_mode<synchronous>, transform_indices = @transform_4, window_bounds = array<i64: 8, 1>}, {pipeline_mode = #tpu.pipeline_mode<synchronous>, transform_indices = @transform_5, window_bounds = array<i64: 6, 16, 16>}, {pipeline_mode = #tpu.pipeline_mode<synchronous>, transform_indices = @transform_6, window_bounds = array<i64: 6, 1, 16>}, {pipeline_mode = #tpu.pipeline_mode<synchronous>, transform_indices = @transform_7, window_bounds = array<i64: 4, 8>}, {pipeline_mode = #tpu.pipeline_mode<synchronous>, transform_indices = @transform_8, window_bounds = array<i64: 4, 1>}, {pipeline_mode = #tpu.pipeline_mode<synchronous>, transform_indices = @transform_9, window_bounds = array<i64: 4, 8>}, {pipeline_mode = #tpu.pipeline_mode<synchronous>, transform_indices = @transform_10, window_bounds = array<i64: 1, 8>}, {pipeline_mode = #tpu.pipeline_mode<synchronous>, transform_indices = @transform_11, window_bounds = array<i64: 8, 2>}, {pipeline_mode = #tpu.pipeline_mode<synchronous>, transform_indices = @transform_12, window_bounds = array<i64: 1, 2>}, {transform_indices = @transform_13, window_bounds = array<i64: 1, 8, 128>}]} {
    %c0 = arith.constant 0 : index
    %c0_0 = arith.constant 0 : index
    %c0_1 = arith.constant 0 : index
    %0 = vector.load %arg1[%c0, %c0_0, %c0_1] : memref<1x32x16xf32, #tpu.memory_space<vmem>>, vector<1x32x16xf32>
    %1 = vector.shape_cast %0 : vector<1x32x16xf32> to vector<32x16xf32>
    %2 = tpu.iota {dimensions = array<i32: 0>} : vector<32x16xi32>
    %3 = tpu.iota {dimensions = array<i32: 1>} : vector<32x16xi32>
    %c2_i32 = arith.constant 2 : i32
    %4 = vector.broadcast %c2_i32 : i32 to vector<32x16xi32>
    %5 = arith.muli %4, %3 : vector<32x16xi32>
    %c0_i32 = arith.constant 0 : i32
    %6 = vector.broadcast %c0_i32 : i32 to vector<32x16xi32>
    %7 = arith.addi %5, %6 : vector<32x16xi32>
    %8 = arith.cmpi eq, %2, %7 : vector<32x16xi32>
    %9 = arith.extui %8 : vector<32x16xi1> to vector<32x16xi32>
    %10 = arith.sitofp %9 : vector<32x16xi32> to vector<32x16xf32>
    %c2_i32_2 = arith.constant 2 : i32
    %11 = vector.broadcast %c2_i32_2 : i32 to vector<32x16xi32>
    %12 = arith.muli %11, %3 : vector<32x16xi32>
    %c1_i32 = arith.constant 1 : i32
    %13 = vector.broadcast %c1_i32 : i32 to vector<32x16xi32>
    %14 = arith.addi %12, %13 : vector<32x16xi32>
    %15 = arith.cmpi eq, %2, %14 : vector<32x16xi32>
    %16 = arith.extui %15 : vector<32x16xi1> to vector<32x16xi32>
    %17 = arith.sitofp %16 : vector<32x16xi32> to vector<32x16xf32>
    %18 = tpu.iota {dimensions = array<i32: 0>} : vector<8x16xi32>
    %19 = tpu.iota {dimensions = array<i32: 1>} : vector<8x16xi32>
    %c2_i32_3 = arith.constant 2 : i32
    %20 = vector.broadcast %c2_i32_3 : i32 to vector<8x16xi32>
    %21 = arith.muli %20, %18 : vector<8x16xi32>
    %c0_i32_4 = arith.constant 0 : i32
    %22 = vector.broadcast %c0_i32_4 : i32 to vector<8x16xi32>
    %23 = arith.addi %21, %22 : vector<8x16xi32>
    %24 = arith.cmpi eq, %19, %23 : vector<8x16xi32>
    %25 = arith.extui %24 : vector<8x16xi1> to vector<8x16xi32>
    %26 = arith.sitofp %25 : vector<8x16xi32> to vector<8x16xf32>
    %c2_i32_5 = arith.constant 2 : i32
    %27 = vector.broadcast %c2_i32_5 : i32 to vector<8x16xi32>
    %28 = arith.muli %27, %18 : vector<8x16xi32>
    %c1_i32_6 = arith.constant 1 : i32
    %29 = vector.broadcast %c1_i32_6 : i32 to vector<8x16xi32>
    %30 = arith.addi %28, %29 : vector<8x16xi32>
    %31 = arith.cmpi eq, %19, %30 : vector<8x16xi32>
    %32 = arith.extui %31 : vector<8x16xi1> to vector<8x16xi32>
    %33 = arith.sitofp %32 : vector<8x16xi32> to vector<8x16xf32>
    %c0_7 = arith.constant 0 : index
    %c0_8 = arith.constant 0 : index
    %c0_9 = arith.constant 0 : index
    %34 = vector.load %arg2[%c0_7, %c0_8, %c0_9] : memref<6x16x16xf32, #tpu.memory_space<vmem>>, vector<1x16x16xf32>
    %35 = vector.shape_cast %34 : vector<1x16x16xf32> to vector<16x16xf32>
    %cst = arith.constant dense<0.000000e+00> : vector<32x16xf32>
    %36 = tpu.matmul %1, %35, %cst {dimension_numbers = #tpu.dot_dimension_numbers<[1], [0], [0], [1], [0, 0, 1, 1], [], []>} : vector<32x16xf32>, vector<16x16xf32>, vector<32x16xf32> -> vector<32x16xf32>
    %c0_10 = arith.constant 0 : index
    %c0_11 = arith.constant 0 : index
    %c0_12 = arith.constant 0 : index
    %37 = vector.load %arg3[%c0_10, %c0_11, %c0_12] : memref<6x1x16xf32, #tpu.memory_space<vmem>>, vector<1x1x16xf32>
    %38 = vector.shape_cast %37 : vector<1x1x16xf32> to vector<1x16xf32>
    %39 = vector.broadcast %38 : vector<1x16xf32> to vector<32x16xf32>
    %40 = arith.addf %36, %39 : vector<32x16xf32>
    %c1 = arith.constant 1 : index
    %c0_13 = arith.constant 0 : index
    %c0_14 = arith.constant 0 : index
    %41 = vector.load %arg2[%c1, %c0_13, %c0_14] : memref<6x16x16xf32, #tpu.memory_space<vmem>>, vector<1x16x16xf32>
    %42 = vector.shape_cast %41 : vector<1x16x16xf32> to vector<16x16xf32>
    %cst_15 = arith.constant dense<0.000000e+00> : vector<32x16xf32>
    %43 = tpu.matmul %1, %42, %cst_15 {dimension_numbers = #tpu.dot_dimension_numbers<[1], [0], [0], [1], [0, 0, 1, 1], [], []>} : vector<32x16xf32>, vector<16x16xf32>, vector<32x16xf32> -> vector<32x16xf32>
    %c1_16 = arith.constant 1 : index
    %c0_17 = arith.constant 0 : index
    %c0_18 = arith.constant 0 : index
    %44 = vector.load %arg3[%c1_16, %c0_17, %c0_18] : memref<6x1x16xf32, #tpu.memory_space<vmem>>, vector<1x1x16xf32>
    %45 = vector.shape_cast %44 : vector<1x1x16xf32> to vector<1x16xf32>
    %46 = vector.broadcast %45 : vector<1x16xf32> to vector<32x16xf32>
    %47 = arith.addf %43, %46 : vector<32x16xf32>
    %c2 = arith.constant 2 : index
    %c0_19 = arith.constant 0 : index
    %c0_20 = arith.constant 0 : index
    %48 = vector.load %arg2[%c2, %c0_19, %c0_20] : memref<6x16x16xf32, #tpu.memory_space<vmem>>, vector<1x16x16xf32>
    %49 = vector.shape_cast %48 : vector<1x16x16xf32> to vector<16x16xf32>
    %cst_21 = arith.constant dense<0.000000e+00> : vector<32x16xf32>
    %50 = tpu.matmul %1, %49, %cst_21 {dimension_numbers = #tpu.dot_dimension_numbers<[1], [0], [0], [1], [0, 0, 1, 1], [], []>} : vector<32x16xf32>, vector<16x16xf32>, vector<32x16xf32> -> vector<32x16xf32>
    %c2_22 = arith.constant 2 : index
    %c0_23 = arith.constant 0 : index
    %c0_24 = arith.constant 0 : index
    %51 = vector.load %arg3[%c2_22, %c0_23, %c0_24] : memref<6x1x16xf32, #tpu.memory_space<vmem>>, vector<1x1x16xf32>
    %52 = vector.shape_cast %51 : vector<1x1x16xf32> to vector<1x16xf32>
    %53 = vector.broadcast %52 : vector<1x16xf32> to vector<32x16xf32>
    %54 = arith.addf %50, %53 : vector<32x16xf32>
    %cst_25 = arith.constant dense<0.000000e+00> : vector<32x32xf32>
    %55 = tpu.matmul %40, %47, %cst_25 {dimension_numbers = #tpu.dot_dimension_numbers<[1], [1], [0], [0], [0, 0, 1, 0], [], []>} : vector<32x16xf32>, vector<32x16xf32>, vector<32x32xf32> -> vector<32x32xf32>
    %cst_26 = arith.constant 2.500000e-01 : f32
    %56 = vector.broadcast %cst_26 : f32 to vector<32x32xf32>
    %57 = arith.mulf %55, %56 : vector<32x32xf32>
    %cst_27 = arith.constant dense<0xFF800000> : vector<32xf32>
    %58 = vector.multi_reduction <maximumf>, %57, %cst_27 [1] : vector<32x32xf32> to vector<32xf32>
    %59 = vector.shape_cast %58 : vector<32xf32> to vector<32x1xf32>
    %60 = vector.broadcast %59 : vector<32x1xf32> to vector<32x32xf32>
    %61 = arith.subf %57, %60 : vector<32x32xf32>
    %62 = math.exp %61 : vector<32x32xf32>
    %cst_28 = arith.constant dense<0.000000e+00> : vector<32xf32>
    %63 = vector.multi_reduction <add>, %62, %cst_28 [1] : vector<32x32xf32> to vector<32xf32>
    %64 = vector.shape_cast %63 : vector<32xf32> to vector<32x1xf32>
    %65 = tpu.reciprocal %64 {approx = true} : vector<32x1xf32> -> vector<32x1xf32>
    %66 = vector.broadcast %65 : vector<32x1xf32> to vector<32x32xf32>
    %67 = arith.mulf %62, %66 : vector<32x32xf32>
    %cst_29 = arith.constant dense<0.000000e+00> : vector<32x16xf32>
    %68 = tpu.matmul %67, %54, %cst_29 {dimension_numbers = #tpu.dot_dimension_numbers<[1], [0], [0], [1], [0, 0, 1, 1], [], []>} : vector<32x32xf32>, vector<32x16xf32>, vector<32x16xf32> -> vector<32x16xf32>
    %69 = vector.extract_strided_slice %68 {offsets = [0, 0], sizes = [16, 16], strides = [1, 1]} : vector<32x16xf32> to vector<16x16xf32>
    %cst_30 = arith.constant dense<0.000000e+00> : vector<32x16xf32>
    %70 = tpu.matmul %10, %69, %cst_30 {dimension_numbers = #tpu.dot_dimension_numbers<[1], [1], [0], [0], [0, 0, 1, 0], [], []>} : vector<32x16xf32>, vector<16x16xf32>, vector<32x16xf32> -> vector<32x16xf32>
    %71 = vector.extract_strided_slice %68 {offsets = [16, 0], sizes = [16, 16], strides = [1, 1]} : vector<32x16xf32> to vector<16x16xf32>
    %cst_31 = arith.constant dense<0.000000e+00> : vector<32x16xf32>
    %72 = tpu.matmul %17, %71, %cst_31 {dimension_numbers = #tpu.dot_dimension_numbers<[1], [1], [0], [0], [0, 0, 1, 0], [], []>} : vector<32x16xf32>, vector<16x16xf32>, vector<32x16xf32> -> vector<32x16xf32>
    %73 = arith.addf %70, %72 : vector<32x16xf32>
    %74 = arith.addf %1, %73 : vector<32x16xf32>
    %c3 = arith.constant 3 : index
    %c0_32 = arith.constant 0 : index
    %c0_33 = arith.constant 0 : index
    %75 = vector.load %arg2[%c3, %c0_32, %c0_33] : memref<6x16x16xf32, #tpu.memory_space<vmem>>, vector<1x16x16xf32>
    %76 = vector.shape_cast %75 : vector<1x16x16xf32> to vector<16x16xf32>
    %cst_34 = arith.constant dense<0.000000e+00> : vector<32x16xf32>
    %77 = tpu.matmul %74, %76, %cst_34 {dimension_numbers = #tpu.dot_dimension_numbers<[1], [0], [0], [1], [0, 0, 1, 1], [], []>} : vector<32x16xf32>, vector<16x16xf32>, vector<32x16xf32> -> vector<32x16xf32>
    %c3_35 = arith.constant 3 : index
    %c0_36 = arith.constant 0 : index
    %c0_37 = arith.constant 0 : index
    %78 = vector.load %arg3[%c3_35, %c0_36, %c0_37] : memref<6x1x16xf32, #tpu.memory_space<vmem>>, vector<1x1x16xf32>
    %79 = vector.shape_cast %78 : vector<1x1x16xf32> to vector<1x16xf32>
    %80 = vector.broadcast %79 : vector<1x16xf32> to vector<32x16xf32>
    %81 = arith.addf %77, %80 : vector<32x16xf32>
    %c4 = arith.constant 4 : index
    %c0_38 = arith.constant 0 : index
    %c0_39 = arith.constant 0 : index
    %82 = vector.load %arg2[%c4, %c0_38, %c0_39] : memref<6x16x16xf32, #tpu.memory_space<vmem>>, vector<1x16x16xf32>
    %83 = vector.shape_cast %82 : vector<1x16x16xf32> to vector<16x16xf32>
    %cst_40 = arith.constant dense<0.000000e+00> : vector<32x16xf32>
    %84 = tpu.matmul %74, %83, %cst_40 {dimension_numbers = #tpu.dot_dimension_numbers<[1], [0], [0], [1], [0, 0, 1, 1], [], []>} : vector<32x16xf32>, vector<16x16xf32>, vector<32x16xf32> -> vector<32x16xf32>
    %c4_41 = arith.constant 4 : index
    %c0_42 = arith.constant 0 : index
    %c0_43 = arith.constant 0 : index
    %85 = vector.load %arg3[%c4_41, %c0_42, %c0_43] : memref<6x1x16xf32, #tpu.memory_space<vmem>>, vector<1x1x16xf32>
    %86 = vector.shape_cast %85 : vector<1x1x16xf32> to vector<1x16xf32>
    %87 = vector.broadcast %86 : vector<1x16xf32> to vector<32x16xf32>
    %88 = arith.addf %84, %87 : vector<32x16xf32>
    %c5 = arith.constant 5 : index
    %c0_44 = arith.constant 0 : index
    %c0_45 = arith.constant 0 : index
    %89 = vector.load %arg2[%c5, %c0_44, %c0_45] : memref<6x16x16xf32, #tpu.memory_space<vmem>>, vector<1x16x16xf32>
    %90 = vector.shape_cast %89 : vector<1x16x16xf32> to vector<16x16xf32>
    %cst_46 = arith.constant dense<0.000000e+00> : vector<32x16xf32>
    %91 = tpu.matmul %74, %90, %cst_46 {dimension_numbers = #tpu.dot_dimension_numbers<[1], [0], [0], [1], [0, 0, 1, 1], [], []>} : vector<32x16xf32>, vector<16x16xf32>, vector<32x16xf32> -> vector<32x16xf32>
    %c5_47 = arith.constant 5 : index
    %c0_48 = arith.constant 0 : index
    %c0_49 = arith.constant 0 : index
    %92 = vector.load %arg3[%c5_47, %c0_48, %c0_49] : memref<6x1x16xf32, #tpu.memory_space<vmem>>, vector<1x1x16xf32>
    %93 = vector.shape_cast %92 : vector<1x1x16xf32> to vector<1x16xf32>
    %94 = vector.broadcast %93 : vector<1x16xf32> to vector<32x16xf32>
    %95 = arith.addf %91, %94 : vector<32x16xf32>
    %cst_50 = arith.constant dense<0.000000e+00> : vector<32x32xf32>
    %96 = tpu.matmul %81, %88, %cst_50 {dimension_numbers = #tpu.dot_dimension_numbers<[1], [1], [0], [0], [0, 0, 1, 0], [], []>} : vector<32x16xf32>, vector<32x16xf32>, vector<32x32xf32> -> vector<32x32xf32>
    %cst_51 = arith.constant 2.500000e-01 : f32
    %97 = vector.broadcast %cst_51 : f32 to vector<32x32xf32>
    %98 = arith.mulf %96, %97 : vector<32x32xf32>
    %cst_52 = arith.constant dense<0xFF800000> : vector<32xf32>
    %99 = vector.multi_reduction <maximumf>, %98, %cst_52 [1] : vector<32x32xf32> to vector<32xf32>
    %100 = vector.shape_cast %99 : vector<32xf32> to vector<32x1xf32>
    %101 = vector.broadcast %100 : vector<32x1xf32> to vector<32x32xf32>
    %102 = arith.subf %98, %101 : vector<32x32xf32>
    %103 = math.exp %102 : vector<32x32xf32>
    %cst_53 = arith.constant dense<0.000000e+00> : vector<32xf32>
    %104 = vector.multi_reduction <add>, %103, %cst_53 [1] : vector<32x32xf32> to vector<32xf32>
    %105 = vector.shape_cast %104 : vector<32xf32> to vector<32x1xf32>
    %106 = tpu.reciprocal %105 {approx = true} : vector<32x1xf32> -> vector<32x1xf32>
    %107 = vector.broadcast %106 : vector<32x1xf32> to vector<32x32xf32>
    %108 = arith.mulf %103, %107 : vector<32x32xf32>
    %cst_54 = arith.constant dense<0.000000e+00> : vector<32x16xf32>
    %109 = tpu.matmul %108, %95, %cst_54 {dimension_numbers = #tpu.dot_dimension_numbers<[1], [0], [0], [1], [0, 0, 1, 1], [], []>} : vector<32x32xf32>, vector<32x16xf32>, vector<32x16xf32> -> vector<32x16xf32>
    %110 = vector.extract_strided_slice %109 {offsets = [0, 0], sizes = [16, 16], strides = [1, 1]} : vector<32x16xf32> to vector<16x16xf32>
    %cst_55 = arith.constant dense<0.000000e+00> : vector<32x16xf32>
    %111 = tpu.matmul %10, %110, %cst_55 {dimension_numbers = #tpu.dot_dimension_numbers<[1], [1], [0], [0], [0, 0, 1, 0], [], []>} : vector<32x16xf32>, vector<16x16xf32>, vector<32x16xf32> -> vector<32x16xf32>
    %112 = vector.extract_strided_slice %109 {offsets = [16, 0], sizes = [16, 16], strides = [1, 1]} : vector<32x16xf32> to vector<16x16xf32>
    %cst_56 = arith.constant dense<0.000000e+00> : vector<32x16xf32>
    %113 = tpu.matmul %17, %112, %cst_56 {dimension_numbers = #tpu.dot_dimension_numbers<[1], [1], [0], [0], [0, 0, 1, 0], [], []>} : vector<32x16xf32>, vector<16x16xf32>, vector<32x16xf32> -> vector<32x16xf32>
    %114 = arith.addf %111, %113 : vector<32x16xf32>
    %115 = arith.addf %74, %114 : vector<32x16xf32>
    %c0_57 = arith.constant 0 : index
    %c0_58 = arith.constant 0 : index
    %116 = vector.load %arg4[%c0_57, %c0_58] : memref<8x32xf32, #tpu.memory_space<vmem>>, vector<8x32xf32>
    %cst_59 = arith.constant dense<0.000000e+00> : vector<8x16xf32>
    %117 = tpu.matmul %116, %115, %cst_59 {dimension_numbers = #tpu.dot_dimension_numbers<[1], [0], [0], [1], [0, 0, 1, 1], [], []>} : vector<8x32xf32>, vector<32x16xf32>, vector<8x16xf32> -> vector<8x16xf32>
    %c0_60 = arith.constant 0 : index
    %c0_61 = arith.constant 0 : index
    %118 = vector.load %arg5[%c0_60, %c0_61] : memref<8x1xf32, #tpu.memory_space<vmem>>, vector<8x1xf32>
    %119 = vector.broadcast %118 : vector<8x1xf32> to vector<8x16xf32>
    %120 = arith.addf %117, %119 : vector<8x16xf32>
    %c0_62 = arith.constant 0 : index
    %c0_63 = arith.constant 0 : index
    %c0_64 = arith.constant 0 : index
    %121 = vector.load %arg6[%c0_62, %c0_63, %c0_64] : memref<6x16x16xf32, #tpu.memory_space<vmem>>, vector<1x16x16xf32>
    %122 = vector.shape_cast %121 : vector<1x16x16xf32> to vector<16x16xf32>
    %cst_65 = arith.constant dense<0.000000e+00> : vector<8x16xf32>
    %123 = tpu.matmul %120, %122, %cst_65 {dimension_numbers = #tpu.dot_dimension_numbers<[1], [0], [0], [1], [0, 0, 1, 1], [], []>} : vector<8x16xf32>, vector<16x16xf32>, vector<8x16xf32> -> vector<8x16xf32>
    %c0_66 = arith.constant 0 : index
    %c0_67 = arith.constant 0 : index
    %c0_68 = arith.constant 0 : index
    %124 = vector.load %arg7[%c0_66, %c0_67, %c0_68] : memref<6x1x16xf32, #tpu.memory_space<vmem>>, vector<1x1x16xf32>
    %125 = vector.shape_cast %124 : vector<1x1x16xf32> to vector<1x16xf32>
    %126 = vector.broadcast %125 : vector<1x16xf32> to vector<8x16xf32>
    %127 = arith.addf %123, %126 : vector<8x16xf32>
    %c1_69 = arith.constant 1 : index
    %c0_70 = arith.constant 0 : index
    %c0_71 = arith.constant 0 : index
    %128 = vector.load %arg6[%c1_69, %c0_70, %c0_71] : memref<6x16x16xf32, #tpu.memory_space<vmem>>, vector<1x16x16xf32>
    %129 = vector.shape_cast %128 : vector<1x16x16xf32> to vector<16x16xf32>
    %cst_72 = arith.constant dense<0.000000e+00> : vector<8x16xf32>
    %130 = tpu.matmul %120, %129, %cst_72 {dimension_numbers = #tpu.dot_dimension_numbers<[1], [0], [0], [1], [0, 0, 1, 1], [], []>} : vector<8x16xf32>, vector<16x16xf32>, vector<8x16xf32> -> vector<8x16xf32>
    %c1_73 = arith.constant 1 : index
    %c0_74 = arith.constant 0 : index
    %c0_75 = arith.constant 0 : index
    %131 = vector.load %arg7[%c1_73, %c0_74, %c0_75] : memref<6x1x16xf32, #tpu.memory_space<vmem>>, vector<1x1x16xf32>
    %132 = vector.shape_cast %131 : vector<1x1x16xf32> to vector<1x16xf32>
    %133 = vector.broadcast %132 : vector<1x16xf32> to vector<8x16xf32>
    %134 = arith.addf %130, %133 : vector<8x16xf32>
    %c2_76 = arith.constant 2 : index
    %c0_77 = arith.constant 0 : index
    %c0_78 = arith.constant 0 : index
    %135 = vector.load %arg6[%c2_76, %c0_77, %c0_78] : memref<6x16x16xf32, #tpu.memory_space<vmem>>, vector<1x16x16xf32>
    %136 = vector.shape_cast %135 : vector<1x16x16xf32> to vector<16x16xf32>
    %cst_79 = arith.constant dense<0.000000e+00> : vector<8x16xf32>
    %137 = tpu.matmul %120, %136, %cst_79 {dimension_numbers = #tpu.dot_dimension_numbers<[1], [0], [0], [1], [0, 0, 1, 1], [], []>} : vector<8x16xf32>, vector<16x16xf32>, vector<8x16xf32> -> vector<8x16xf32>
    %c2_80 = arith.constant 2 : index
    %c0_81 = arith.constant 0 : index
    %c0_82 = arith.constant 0 : index
    %138 = vector.load %arg7[%c2_80, %c0_81, %c0_82] : memref<6x1x16xf32, #tpu.memory_space<vmem>>, vector<1x1x16xf32>
    %139 = vector.shape_cast %138 : vector<1x1x16xf32> to vector<1x16xf32>
    %140 = vector.broadcast %139 : vector<1x16xf32> to vector<8x16xf32>
    %141 = arith.addf %137, %140 : vector<8x16xf32>
    %cst_83 = arith.constant dense<0.000000e+00> : vector<8x8xf32>
    %142 = tpu.matmul %127, %134, %cst_83 {dimension_numbers = #tpu.dot_dimension_numbers<[1], [1], [0], [0], [0, 0, 1, 0], [], []>} : vector<8x16xf32>, vector<8x16xf32>, vector<8x8xf32> -> vector<8x8xf32>
    %cst_84 = arith.constant 2.500000e-01 : f32
    %143 = vector.broadcast %cst_84 : f32 to vector<8x8xf32>
    %144 = arith.mulf %142, %143 : vector<8x8xf32>
    %cst_85 = arith.constant dense<0xFF800000> : vector<8xf32>
    %145 = vector.multi_reduction <maximumf>, %144, %cst_85 [1] : vector<8x8xf32> to vector<8xf32>
    %146 = vector.shape_cast %145 : vector<8xf32> to vector<8x1xf32>
    %147 = vector.broadcast %146 : vector<8x1xf32> to vector<8x8xf32>
    %148 = arith.subf %144, %147 : vector<8x8xf32>
    %149 = math.exp %148 : vector<8x8xf32>
    %cst_86 = arith.constant dense<0.000000e+00> : vector<8xf32>
    %150 = vector.multi_reduction <add>, %149, %cst_86 [1] : vector<8x8xf32> to vector<8xf32>
    %151 = vector.shape_cast %150 : vector<8xf32> to vector<8x1xf32>
    %152 = tpu.reciprocal %151 {approx = true} : vector<8x1xf32> -> vector<8x1xf32>
    %153 = vector.broadcast %152 : vector<8x1xf32> to vector<8x8xf32>
    %154 = arith.mulf %149, %153 : vector<8x8xf32>
    %cst_87 = arith.constant dense<0.000000e+00> : vector<8x16xf32>
    %155 = tpu.matmul %154, %141, %cst_87 {dimension_numbers = #tpu.dot_dimension_numbers<[1], [0], [0], [1], [0, 0, 1, 1], [], []>} : vector<8x8xf32>, vector<8x16xf32>, vector<8x16xf32> -> vector<8x16xf32>
    %cst_88 = arith.constant dense<0.000000e+00> : vector<8x8xf32>
    %156 = tpu.matmul %26, %155, %cst_88 {dimension_numbers = #tpu.dot_dimension_numbers<[1], [1], [0], [0], [0, 0, 1, 0], [], []>} : vector<8x16xf32>, vector<8x16xf32>, vector<8x8xf32> -> vector<8x8xf32>
    %cst_89 = arith.constant dense<0.000000e+00> : vector<8x8xf32>
    %157 = tpu.matmul %33, %155, %cst_89 {dimension_numbers = #tpu.dot_dimension_numbers<[1], [1], [0], [0], [0, 0, 1, 0], [], []>} : vector<8x16xf32>, vector<8x16xf32>, vector<8x8xf32> -> vector<8x8xf32>
    %158 = tpu.concatenate %156, %157 in 1 : vector<8x8xf32>, vector<8x8xf32> -> vector<8x16xf32>
    %159 = arith.addf %120, %158 : vector<8x16xf32>
    %c3_90 = arith.constant 3 : index
    %c0_91 = arith.constant 0 : index
    %c0_92 = arith.constant 0 : index
    %160 = vector.load %arg6[%c3_90, %c0_91, %c0_92] : memref<6x16x16xf32, #tpu.memory_space<vmem>>, vector<1x16x16xf32>
    %161 = vector.shape_cast %160 : vector<1x16x16xf32> to vector<16x16xf32>
    %cst_93 = arith.constant dense<0.000000e+00> : vector<8x16xf32>
    %162 = tpu.matmul %159, %161, %cst_93 {dimension_numbers = #tpu.dot_dimension_numbers<[1], [0], [0], [1], [0, 0, 1, 1], [], []>} : vector<8x16xf32>, vector<16x16xf32>, vector<8x16xf32> -> vector<8x16xf32>
    %c3_94 = arith.constant 3 : index
    %c0_95 = arith.constant 0 : index
    %c0_96 = arith.constant 0 : index
    %163 = vector.load %arg7[%c3_94, %c0_95, %c0_96] : memref<6x1x16xf32, #tpu.memory_space<vmem>>, vector<1x1x16xf32>
    %164 = vector.shape_cast %163 : vector<1x1x16xf32> to vector<1x16xf32>
    %165 = vector.broadcast %164 : vector<1x16xf32> to vector<8x16xf32>
    %166 = arith.addf %162, %165 : vector<8x16xf32>
    %c4_97 = arith.constant 4 : index
    %c0_98 = arith.constant 0 : index
    %c0_99 = arith.constant 0 : index
    %167 = vector.load %arg6[%c4_97, %c0_98, %c0_99] : memref<6x16x16xf32, #tpu.memory_space<vmem>>, vector<1x16x16xf32>
    %168 = vector.shape_cast %167 : vector<1x16x16xf32> to vector<16x16xf32>
    %cst_100 = arith.constant dense<0.000000e+00> : vector<8x16xf32>
    %169 = tpu.matmul %159, %168, %cst_100 {dimension_numbers = #tpu.dot_dimension_numbers<[1], [0], [0], [1], [0, 0, 1, 1], [], []>} : vector<8x16xf32>, vector<16x16xf32>, vector<8x16xf32> -> vector<8x16xf32>
    %c4_101 = arith.constant 4 : index
    %c0_102 = arith.constant 0 : index
    %c0_103 = arith.constant 0 : index
    %170 = vector.load %arg7[%c4_101, %c0_102, %c0_103] : memref<6x1x16xf32, #tpu.memory_space<vmem>>, vector<1x1x16xf32>
    %171 = vector.shape_cast %170 : vector<1x1x16xf32> to vector<1x16xf32>
    %172 = vector.broadcast %171 : vector<1x16xf32> to vector<8x16xf32>
    %173 = arith.addf %169, %172 : vector<8x16xf32>
    %c5_104 = arith.constant 5 : index
    %c0_105 = arith.constant 0 : index
    %c0_106 = arith.constant 0 : index
    %174 = vector.load %arg6[%c5_104, %c0_105, %c0_106] : memref<6x16x16xf32, #tpu.memory_space<vmem>>, vector<1x16x16xf32>
    %175 = vector.shape_cast %174 : vector<1x16x16xf32> to vector<16x16xf32>
    %cst_107 = arith.constant dense<0.000000e+00> : vector<8x16xf32>
    %176 = tpu.matmul %159, %175, %cst_107 {dimension_numbers = #tpu.dot_dimension_numbers<[1], [0], [0], [1], [0, 0, 1, 1], [], []>} : vector<8x16xf32>, vector<16x16xf32>, vector<8x16xf32> -> vector<8x16xf32>
    %c5_108 = arith.constant 5 : index
    %c0_109 = arith.constant 0 : index
    %c0_110 = arith.constant 0 : index
    %177 = vector.load %arg7[%c5_108, %c0_109, %c0_110] : memref<6x1x16xf32, #tpu.memory_space<vmem>>, vector<1x1x16xf32>
    %178 = vector.shape_cast %177 : vector<1x1x16xf32> to vector<1x16xf32>
    %179 = vector.broadcast %178 : vector<1x16xf32> to vector<8x16xf32>
    %180 = arith.addf %176, %179 : vector<8x16xf32>
    %cst_111 = arith.constant dense<0.000000e+00> : vector<8x8xf32>
    %181 = tpu.matmul %166, %173, %cst_111 {dimension_numbers = #tpu.dot_dimension_numbers<[1], [1], [0], [0], [0, 0, 1, 0], [], []>} : vector<8x16xf32>, vector<8x16xf32>, vector<8x8xf32> -> vector<8x8xf32>
    %cst_112 = arith.constant 2.500000e-01 : f32
    %182 = vector.broadcast %cst_112 : f32 to vector<8x8xf32>
    %183 = arith.mulf %181, %182 : vector<8x8xf32>
    %cst_113 = arith.constant dense<0xFF800000> : vector<8xf32>
    %184 = vector.multi_reduction <maximumf>, %183, %cst_113 [1] : vector<8x8xf32> to vector<8xf32>
    %185 = vector.shape_cast %184 : vector<8xf32> to vector<8x1xf32>
    %186 = vector.broadcast %185 : vector<8x1xf32> to vector<8x8xf32>
    %187 = arith.subf %183, %186 : vector<8x8xf32>
    %188 = math.exp %187 : vector<8x8xf32>
    %cst_114 = arith.constant dense<0.000000e+00> : vector<8xf32>
    %189 = vector.multi_reduction <add>, %188, %cst_114 [1] : vector<8x8xf32> to vector<8xf32>
    %190 = vector.shape_cast %189 : vector<8xf32> to vector<8x1xf32>
    %191 = tpu.reciprocal %190 {approx = true} : vector<8x1xf32> -> vector<8x1xf32>
    %192 = vector.broadcast %191 : vector<8x1xf32> to vector<8x8xf32>
    %193 = arith.mulf %188, %192 : vector<8x8xf32>
    %cst_115 = arith.constant dense<0.000000e+00> : vector<8x16xf32>
    %194 = tpu.matmul %193, %180, %cst_115 {dimension_numbers = #tpu.dot_dimension_numbers<[1], [0], [0], [1], [0, 0, 1, 1], [], []>} : vector<8x8xf32>, vector<8x16xf32>, vector<8x16xf32> -> vector<8x16xf32>
    %cst_116 = arith.constant dense<0.000000e+00> : vector<8x8xf32>
    %195 = tpu.matmul %26, %194, %cst_116 {dimension_numbers = #tpu.dot_dimension_numbers<[1], [1], [0], [0], [0, 0, 1, 0], [], []>} : vector<8x16xf32>, vector<8x16xf32>, vector<8x8xf32> -> vector<8x8xf32>
    %cst_117 = arith.constant dense<0.000000e+00> : vector<8x8xf32>
    %196 = tpu.matmul %33, %194, %cst_117 {dimension_numbers = #tpu.dot_dimension_numbers<[1], [1], [0], [0], [0, 0, 1, 0], [], []>} : vector<8x16xf32>, vector<8x16xf32>, vector<8x8xf32> -> vector<8x8xf32>
    %197 = tpu.concatenate %195, %196 in 1 : vector<8x8xf32>, vector<8x8xf32> -> vector<8x16xf32>
    %198 = arith.addf %159, %197 : vector<8x16xf32>
    %c0_118 = arith.constant 0 : index
    %c0_119 = arith.constant 0 : index
    %199 = vector.load %arg8[%c0_118, %c0_119] : memref<4x8xf32, #tpu.memory_space<vmem>>, vector<4x8xf32>
    %cst_120 = arith.constant dense<0.000000e+00> : vector<4x16xf32>
    %200 = tpu.matmul %199, %198, %cst_120 {dimension_numbers = #tpu.dot_dimension_numbers<[1], [0], [0], [1], [0, 0, 1, 1], [], []>} : vector<4x8xf32>, vector<8x16xf32>, vector<4x16xf32> -> vector<4x16xf32>
    %c0_121 = arith.constant 0 : index
    %c0_122 = arith.constant 0 : index
    %201 = vector.load %arg9[%c0_121, %c0_122] : memref<4x1xf32, #tpu.memory_space<vmem>>, vector<4x1xf32>
    %202 = vector.broadcast %201 : vector<4x1xf32> to vector<4x16xf32>
    %203 = arith.addf %200, %202 : vector<4x16xf32>
    %c0_123 = arith.constant 0 : index
    %c0_124 = arith.constant 0 : index
    %204 = vector.load %arg10[%c0_123, %c0_124] : memref<4x8xf32, #tpu.memory_space<vmem>>, vector<4x8xf32>
    %cst_125 = arith.constant dense<0.000000e+00> : vector<16x8xf32>
    %205 = tpu.matmul %203, %204, %cst_125 {dimension_numbers = #tpu.dot_dimension_numbers<[0], [0], [1], [1], [0, 1, 1, 1], [], []>} : vector<4x16xf32>, vector<4x8xf32>, vector<16x8xf32> -> vector<16x8xf32>
    %c0_126 = arith.constant 0 : index
    %c0_127 = arith.constant 0 : index
    %206 = vector.load %arg11[%c0_126, %c0_127] : memref<1x8xf32, #tpu.memory_space<vmem>>, vector<1x8xf32>
    %207 = vector.broadcast %206 : vector<1x8xf32> to vector<16x8xf32>
    %208 = arith.addf %205, %207 : vector<16x8xf32>
    %cst_128 = arith.constant 0.000000e+00 : f32
    %209 = vector.broadcast %cst_128 : f32 to vector<16x8xf32>
    %210 = arith.maximumf %208, %209 : vector<16x8xf32>
    %c0_129 = arith.constant 0 : index
    %c0_130 = arith.constant 0 : index
    %211 = vector.load %arg12[%c0_129, %c0_130] : memref<8x2xf32, #tpu.memory_space<vmem>>, vector<8x2xf32>
    %cst_131 = arith.constant dense<0.000000e+00> : vector<16x2xf32>
    %212 = tpu.matmul %210, %211, %cst_131 {dimension_numbers = #tpu.dot_dimension_numbers<[1], [0], [0], [1], [0, 0, 1, 1], [], []>} : vector<16x8xf32>, vector<8x2xf32>, vector<16x2xf32> -> vector<16x2xf32>
    %c0_132 = arith.constant 0 : index
    %c0_133 = arith.constant 0 : index
    %213 = vector.load %arg13[%c0_132, %c0_133] : memref<1x2xf32, #tpu.memory_space<vmem>>, vector<1x2xf32>
    %214 = vector.broadcast %213 : vector<1x2xf32> to vector<16x2xf32>
    %215 = arith.addf %212, %214 : vector<16x2xf32>
    %216 = vector.extract_strided_slice %215 {offsets = [0, 0], sizes = [16, 1], strides = [1, 1]} : vector<16x2xf32> to vector<16x1xf32>
    %cst_134 = arith.constant 0.000000e+00 : f32
    %217 = vector.broadcast %cst_134 : f32 to vector<16x1xf32>
    %218 = arith.maximumf %216, %217 : vector<16x1xf32>
    %219 = vector.extract_strided_slice %215 {offsets = [0, 1], sizes = [16, 1], strides = [1, 1]} : vector<16x2xf32> to vector<16x1xf32>
    %220 = arith.negf %219 : vector<16x1xf32>
    %221 = math.exp %220 : vector<16x1xf32>
    %cst_135 = arith.constant 1.000000e+00 : f32
    %222 = vector.broadcast %cst_135 : f32 to vector<16x1xf32>
    %223 = arith.addf %222, %221 : vector<16x1xf32>
    %224 = arith.divf %222, %223 : vector<16x1xf32>
    %225 = arith.mulf %218, %224 : vector<16x1xf32>
    %cst_136 = arith.constant dense<0.000000e+00> : vector<1xf32>
    %226 = vector.multi_reduction <add>, %225, %cst_136 [0] : vector<16x1xf32> to vector<1xf32>
    %227 = vector.shape_cast %226 : vector<1xf32> to vector<1x1xf32>
    %cst_137 = arith.constant dense<0.000000e+00> : vector<1xf32>
    %228 = vector.multi_reduction <add>, %224, %cst_137 [0] : vector<16x1xf32> to vector<1xf32>
    %229 = vector.shape_cast %228 : vector<1xf32> to vector<1x1xf32>
    %230 = arith.divf %227, %229 : vector<1x1xf32>
    %231 = vector.shape_cast %230 : vector<1x1xf32> to vector<1x1x1xf32>
    %232 = vector.broadcast %231 : vector<1x1x1xf32> to vector<1x8x128xf32>
    %c0_138 = arith.constant 0 : index
    %c0_139 = arith.constant 0 : index
    %c0_140 = arith.constant 0 : index
    %233 = vector.load %arg14[%c0_138, %c0_139, %c0_140] : memref<1x8x128xf32, #tpu.memory_space<vmem>>, vector<1x8x128xf32>
    tpu.vector_store %arg14[%c0_138, %c0_139, %c0_140], %232 {strides = array<i32>} : memref<1x8x128xf32, #tpu.memory_space<vmem>>, vector<1x8x128xf32>,
    return
  }
  func.func @transform_0(%arg0: i32) -> (i32, i32, i32) {
    %c0_i32 = arith.constant 0 : i32
    %c0_i32_0 = arith.constant 0 : i32
    %c0_i32_1 = arith.constant 0 : i32
    return %arg0, %c0_i32, %c0_i32_0 : i32, i32, i32
  }
  func.func @transform_1(%arg0: i32) -> (i32, i32, i32) {
    %c0_i32 = arith.constant 0 : i32
    %c0_i32_0 = arith.constant 0 : i32
    %c0_i32_1 = arith.constant 0 : i32
    %c0_i32_2 = arith.constant 0 : i32
    return %c0_i32, %c0_i32_0, %c0_i32_1 : i32, i32, i32
  }
  func.func @transform_2(%arg0: i32) -> (i32, i32, i32) {
    %c0_i32 = arith.constant 0 : i32
    %c0_i32_0 = arith.constant 0 : i32
    %c0_i32_1 = arith.constant 0 : i32
    %c0_i32_2 = arith.constant 0 : i32
    return %c0_i32, %c0_i32_0, %c0_i32_1 : i32, i32, i32
  }
  func.func @transform_3(%arg0: i32) -> (i32, i32) {
    %c0_i32 = arith.constant 0 : i32
    %c0_i32_0 = arith.constant 0 : i32
    %c0_i32_1 = arith.constant 0 : i32
    return %c0_i32, %c0_i32_0 : i32, i32
  }
  func.func @transform_4(%arg0: i32) -> (i32, i32) {
    %c0_i32 = arith.constant 0 : i32
    %c0_i32_0 = arith.constant 0 : i32
    %c0_i32_1 = arith.constant 0 : i32
    return %c0_i32, %c0_i32_0 : i32, i32
  }
  func.func @transform_5(%arg0: i32) -> (i32, i32, i32) {
    %c0_i32 = arith.constant 0 : i32
    %c0_i32_0 = arith.constant 0 : i32
    %c0_i32_1 = arith.constant 0 : i32
    %c0_i32_2 = arith.constant 0 : i32
    return %c0_i32, %c0_i32_0, %c0_i32_1 : i32, i32, i32
  }
  func.func @transform_6(%arg0: i32) -> (i32, i32, i32) {
    %c0_i32 = arith.constant 0 : i32
    %c0_i32_0 = arith.constant 0 : i32
    %c0_i32_1 = arith.constant 0 : i32
    %c0_i32_2 = arith.constant 0 : i32
    return %c0_i32, %c0_i32_0, %c0_i32_1 : i32, i32, i32
  }
  func.func @transform_7(%arg0: i32) -> (i32, i32) {
    %c0_i32 = arith.constant 0 : i32
    %c0_i32_0 = arith.constant 0 : i32
    %c0_i32_1 = arith.constant 0 : i32
    return %c0_i32, %c0_i32_0 : i32, i32
  }
  func.func @transform_8(%arg0: i32) -> (i32, i32) {
    %c0_i32 = arith.constant 0 : i32
    %c0_i32_0 = arith.constant 0 : i32
    %c0_i32_1 = arith.constant 0 : i32
    return %c0_i32, %c0_i32_0 : i32, i32
  }
  func.func @transform_9(%arg0: i32) -> (i32, i32) {
    %c0_i32 = arith.constant 0 : i32
    %c0_i32_0 = arith.constant 0 : i32
    %c0_i32_1 = arith.constant 0 : i32
    return %c0_i32, %c0_i32_0 : i32, i32
  }
  func.func @transform_10(%arg0: i32) -> (i32, i32) {
    %c0_i32 = arith.constant 0 : i32
    %c0_i32_0 = arith.constant 0 : i32
    %c0_i32_1 = arith.constant 0 : i32
    return %c0_i32, %c0_i32_0 : i32, i32
  }
  func.func @transform_11(%arg0: i32) -> (i32, i32) {
    %c0_i32 = arith.constant 0 : i32
    %c0_i32_0 = arith.constant 0 : i32
    %c0_i32_1 = arith.constant 0 : i32
    return %c0_i32, %c0_i32_0 : i32, i32
  }
  func.func @transform_12(%arg0: i32) -> (i32, i32) {
    %c0_i32 = arith.constant 0 : i32
    %c0_i32_0 = arith.constant 0 : i32
    %c0_i32_1 = arith.constant 0 : i32
    return %c0_i32, %c0_i32_0 : i32, i32
  }
  func.func @transform_13(%arg0: i32) -> (i32, i32, i32) {
    %c0_i32 = arith.constant 0 : i32
    %c0_i32_0 = arith.constant 0 : i32
    %c0_i32_1 = arith.constant 0 : i32
    return %arg0, %c0_i32, %c0_i32_0 : i32, i32, i32
  }
}

</mosaic_0001>

<llo_original>
// kernel: maniqa_forward.1
$region0: #{maniqa_forward.1}
  #allocation0 [shape = 'u32[]', space=smem, size = 0x4, offset = 0x4, fixed_abs, tag = 'smem constant byte address 0x4 - core index']
  #allocation1 [shape = 'u32[72,128]{1,0:T(1,128)}', space=vmem, size = 0x9000, scoped, tag = 'internal scratch']
  %s0 = inlined_call_operand.vmem [shape: f32[2,32,16], index: 0, kind: input, shape index: {}]
  %s1 = inlined_call_operand.vmem [shape: f32[6,16,16], index: 1, kind: input, shape index: {}]
  %s2 = inlined_call_operand.vmem [shape: f32[6,1,16], index: 2, kind: input, shape index: {}]
  %s3 = inlined_call_operand.vmem [shape: f32[8,32], index: 3, kind: input, shape index: {}]
  %s4 = inlined_call_operand.vmem [shape: f32[8,1], index: 4, kind: input, shape index: {}]
  %s5 = inlined_call_operand.hbm [shape: f32[6,16,16], index: 5, kind: input, shape index: {}]
  %s6 = inlined_call_operand.vmem [shape: f32[6,1,16], index: 6, kind: input, shape index: {}]
  %s7 = inlined_call_operand.vmem [shape: f32[4,8], index: 7, kind: input, shape index: {}]
  %s8 = inlined_call_operand.vmem [shape: f32[4,1], index: 8, kind: input, shape index: {}]
  %s9 = inlined_call_operand.hbm [shape: f32[4,8], index: 9, kind: input, shape index: {}]
  %s10 = inlined_call_operand.vmem [shape: f32[1,8], index: 10, kind: input, shape index: {}]
  %s11 = inlined_call_operand.vmem [shape: f32[8,2], index: 11, kind: input, shape index: {}]
  %s12 = inlined_call_operand.vmem [shape: f32[1,2], index: 12, kind: input, shape index: {}]
  %s13 = inlined_call_operand.vmem [shape: f32[2,8,128], index: 13, kind: output, shape index: {}]
  %s14 = sld [smem:[#allocation0]]
  $region93: #{maniqa_forward.1} parent=0
    _
  %s16 = ssub.s32 1, %s14
  %s17 = scalar_select 0, %s16, %s14
  $region1: #{maniqa_forward.1} parent=0
    #allocation2 [shape = 'u8[49152]{0}', space=vmem, size = 0xc000, scoped, tag = 'input window, operand 5, single buffered']
    #allocation3 [shape = 's32[2]{0}', space=sflag, size = 0x8, scoped, tag = 'scoped memory for maniqa_forward.1']
    #allocation4 [shape = 'u8[2048]{0}', space=vmem, size = 0x800, scoped, tag = 'input window, operand 9, single buffered']
    #allocation5 [shape = 's32[1]{0}', space=sflag, size = 0x4, scoped, tag = 'scoped memory for maniqa_forward.1']
    %18 = vsyncpa [#allocation3], 0
    %19 = vsyncpa [#allocation5], 0
    loop: start=0, step=1, limit=4
    $region2: #{maniqa_forward.1} parent=1 // loop_pre_header
      _
    $region3: #{maniqa_forward.1} parent=1 // loop_header
      %s21 = sphi 0, %s25
      %p22 = scmp.ge.s32.totalorder %s21, 4
      %s31 = sphi 0, %s33
      %s34 = sphi 0, %s31
      %s35 = sphi 0, %s34
      %s51 = sphi 0, %s35
      %s55 = sphi 0, %s55
      %s57 = sphi 0, %s55
      %s58 = sphi 0, %s57
      %s72 = sphi 0, %s58
      %s76 = sphi 0, %s76
      %s78 = sphi 0, %s76
      %s79 = sphi 0, %s78
      %s93 = sphi 0, %s79
      %s97 = sphi 0, %s97
      %s99 = sphi 0, %s97
      %s100 = sphi 0, %s99
      %s114 = sphi 0, %s100
      %s118 = sphi 0, %s118
      %s120 = sphi 0, %s118
      %s121 = sphi 0, %s120
      %s135 = sphi 0, %s121
      %s139 = sphi 0, %s139
      %s141 = sphi 0, %s139
      %s142 = sphi 0, %s141
      %s156 = sphi 0, %s142
      %s160 = sphi 0, %s160
      %s162 = sphi 0, %s160
      %s163 = sphi 0, %s162
      %s177 = sphi 0, %s163
      %s181 = sphi 0, %s181
      %s183 = sphi 0, %s181
      %s184 = sphi 0, %s183
      %s198 = sphi 0, %s184
      %s202 = sphi 0, %s202
      %s204 = sphi 0, %s202
      %s205 = sphi 0, %s204
      %s219 = sphi 0, %s205
      %s223 = sphi 0, %s223
      %s225 = sphi 0, %s223
      %s226 = sphi 0, %s225
      %s240 = sphi 0, %s226
      %s244 = sphi 0, %s244
      %s246 = sphi 0, %s244
      %s247 = sphi 0, %s246
      %s261 = sphi 0, %s247
      %s265 = sphi 0, %s265
      %s267 = sphi 0, %s265
      %s268 = sphi 0, %s267
      %s282 = sphi 0, %s268
      %s286 = sphi 0, %s286
      %s288 = sphi 0, %s286
      %s289 = sphi 0, %s288
      %s303 = sphi 0, %s289
      %s309 = sphi 0, %s311
      %s312 = sphi 0, %s309
      %s313 = sphi 0, %s312
      %s329 = sphi 0, %s313
    $region4: #{maniqa_forward.1} parent=1 // loop_header_branch
      %24 = sbr.rel (%p22) target = $region8
    $region5: #{maniqa_forward.1} parent=1 // loop_body
      %s26 = ssub.s32 %s21, 1
      %s27 = ssub.s32 %s21, 2
      %s28 = sadd.s32 %s21, 1
      %s29 = ssub.s32 %s21, %s28
      %p30 = scmp.eq.s32.totalorder %s29, 0
      %s32 = sadd.s32 %s31, 1
      %s33 = scalar_select %p30, %s31, %s32
      %p36 = pneg %p30
      %p37 = scmp.eq.s32.totalorder %s21, 1
      %p38 = por %p36, %p37
      %p39 = scmp.ne.s32.totalorder %s31, %s34
      %p40 = scmp.eq.s32.totalorder %s21, 0
      %p41 = por %p39, %p40
      %p42 = scmp.ne.s32.totalorder %s31, %s34
      %p43 = scmp.eq.s32.totalorder %s26, 1
      %p44 = por %p42, %p43
      %p45 = scmp.ne.s32.totalorder %s34, %s35
      %p46 = scmp.eq.s32.totalorder %s26, 0
      %p47 = por %p45, %p46
      %p48 = scmp.ne.s32.totalorder %s34, %s35
      %p49 = scmp.eq.s32.totalorder %s27, 1
      %p50 = por %p48, %p49
      %p52 = scmp.ne.s32.totalorder %s35, %s51
      %p53 = scmp.eq.s32.totalorder %s27, 0
      %p54 = por %p52, %p53
      %s56 = sadd.s32 %s55, 1
      %p59 = scmp.eq.s32.totalorder %s21, 1
      %p60 = scmp.ne.s32.totalorder %s55, %s57
      %p61 = scmp.eq.s32.totalorder %s21, 0
      %p62 = por %p60, %p61
      %p63 = scmp.ne.s32.totalorder %s55, %s57
      %p64 = scmp.eq.s32.totalorder %s26, 1
      %p65 = por %p63, %p64
      %p66 = scmp.ne.s32.totalorder %s57, %s58
      %p67 = scmp.eq.s32.totalorder %s26, 0
      %p68 = por %p66, %p67
      %p69 = scmp.ne.s32.totalorder %s57, %s58
      %p70 = scmp.eq.s32.totalorder %s27, 1
      %p71 = por %p69, %p70
      %p73 = scmp.ne.s32.totalorder %s58, %s72
      %p74 = scmp.eq.s32.totalorder %s27, 0
      %p75 = por %p73, %p74
      %s77 = sadd.s32 %s76, 1
      %p80 = scmp.eq.s32.totalorder %s21, 1
      %p81 = scmp.ne.s32.totalorder %s76, %s78
      %p82 = scmp.eq.s32.totalorder %s21, 0
      %p83 = por %p81, %p82
      %p84 = scmp.ne.s32.totalorder %s76, %s78
      %p85 = scmp.eq.s32.totalorder %s26, 1
      %p86 = por %p84, %p85
      %p87 = scmp.ne.s32.totalorder %s78, %s79
      %p88 = scmp.eq.s32.totalorder %s26, 0
      %p89 = por %p87, %p88
      %p90 = scmp.ne.s32.totalorder %s78, %s79
      %p91 = scmp.eq.s32.totalorder %s27, 1
      %p92 = por %p90, %p91
      %p94 = scmp.ne.s32.totalorder %s79, %s93
      %p95 = scmp.eq.s32.totalorder %s27, 0
      %p96 = por %p94, %p95
      %s98 = sadd.s32 %s97, 1
      %p101 = scmp.eq.s32.totalorder %s21, 1
      %p102 = scmp.ne.s32.totalorder %s97, %s99
      %p103 = scmp.eq.s32.totalorder %s21, 0
      %p104 = por %p102, %p103
      %p105 = scmp.ne.s32.totalorder %s97, %s99
      %p106 = scmp.eq.s32.totalorder %s26, 1
      %p107 = por %p105, %p106
      %p108 = scmp.ne.s32.totalorder %s99, %s100
      %p109 = scmp.eq.s32.totalorder %s26, 0
      %p110 = por %p108, %p109
      %p111 = scmp.ne.s32.totalorder %s99, %s100
      %p112 = scmp.eq.s32.totalorder %s27, 1
      %p113 = por %p111, %p112
      %p115 = scmp.ne.s32.totalorder %s100, %s114
      %p116 = scmp.eq.s32.totalorder %s27, 0
      %p117 = por %p115, %p116
      %s119 = sadd.s32 %s118, 1
      %p122 = scmp.eq.s32.totalorder %s21, 1
      %p123 = scmp.ne.s32.totalorder %s118, %s120
      %p124 = scmp.eq.s32.totalorder %s21, 0
      %p125 = por %p123, %p124
      %p126 = scmp.ne.s32.totalorder %s118, %s120
      %p127 = scmp.eq.s32.totalorder %s26, 1
      %p128 = por %p126, %p127
      %p129 = scmp.ne.s32.totalorder %s120, %s121
      %p130 = scmp.eq.s32.totalorder %s26, 0
      %p131 = por %p129, %p130
      %p132 = scmp.ne.s32.totalorder %s120, %s121
      %p133 = scmp.eq.s32.totalorder %s27, 1
      %p134 = por %p132, %p133
      %p136 = scmp.ne.s32.totalorder %s121, %s135
      %p137 = scmp.eq.s32.totalorder %s27, 0
      %p138 = por %p136, %p137
      %s140 = sadd.s32 %s139, 1
      %p143 = scmp.eq.s32.totalorder %s21, 1
      %p144 = scmp.ne.s32.totalorder %s139, %s141
      %p145 = scmp.eq.s32.totalorder %s21, 0
      %p146 = por %p144, %p145
      %p147 = scmp.ne.s32.totalorder %s139, %s141
      %p148 = scmp.eq.s32.totalorder %s26, 1
      %p149 = por %p147, %p148
      %p150 = scmp.ne.s32.totalorder %s141, %s142
      %p151 = scmp.eq.s32.totalorder %s26, 0
      %p152 = por %p150, %p151
      %p153 = scmp.ne.s32.totalorder %s141, %s142
      %p154 = scmp.eq.s32.totalorder %s27, 1
      %p155 = por %p153, %p154
      %p157 = scmp.ne.s32.totalorder %s142, %s156
      %p158 = scmp.eq.s32.totalorder %s27, 0
      %p159 = por %p157, %p158
      %s161 = sadd.s32 %s160, 1
      %p164 = scmp.eq.s32.totalorder %s21, 1
      %p165 = scmp.ne.s32.totalorder %s160, %s162
      %p166 = scmp.eq.s32.totalorder %s21, 0
      %p167 = por %p165, %p166
      %p168 = scmp.ne.s32.totalorder %s160, %s162
      %p169 = scmp.eq.s32.totalorder %s26, 1
      %p170 = por %p168, %p169
      %p171 = scmp.ne.s32.totalorder %s162, %s163
      %p172 = scmp.eq.s32.totalorder %s26, 0
      %p173 = por %p171, %p172
      %p174 = scmp.ne.s32.totalorder %s162, %s163
      %p175 = scmp.eq.s32.totalorder %s27, 1
      %p176 = por %p174, %p175
      %p178 = scmp.ne.s32.totalorder %s163, %s177
      %p179 = scmp.eq.s32.totalorder %s27, 0
      %p180 = por %p178, %p179
      %s182 = sadd.s32 %s181, 1
      %p185 = scmp.eq.s32.totalorder %s21, 1
      %p186 = scmp.ne.s32.totalorder %s181, %s183
      %p187 = scmp.eq.s32.totalorder %s21, 0
      %p188 = por %p186, %p187
      %p189 = scmp.ne.s32.totalorder %s181, %s183
      %p190 = scmp.eq.s32.totalorder %s26, 1
      %p191 = por %p189, %p190
      %p192 = scmp.ne.s32.totalorder %s183, %s184
      %p193 = scmp.eq.s32.totalorder %s26, 0
      %p194 = por %p192, %p193
      %p195 = scmp.ne.s32.totalorder %s183, %s184
      %p196 = scmp.eq.s32.totalorder %s27, 1
      %p197 = por %p195, %p196
      %p199 = scmp.ne.s32.totalorder %s184, %s198
      %p200 = scmp.eq.s32.totalorder %s27, 0
      %p201 = por %p199, %p200
      %s203 = sadd.s32 %s202, 1
      %p206 = scmp.eq.s32.totalorder %s21, 1
      %p207 = scmp.ne.s32.totalorder %s202, %s204
      %p208 = scmp.eq.s32.totalorder %s21, 0
      %p209 = por %p207, %p208
      %p210 = scmp.ne.s32.totalorder %s202, %s204
      %p211 = scmp.eq.s32.totalorder %s26, 1
      %p212 = por %p210, %p211
      %p213 = scmp.ne.s32.totalorder %s204, %s205
      %p214 = scmp.eq.s32.totalorder %s26, 0
      %p215 = por %p213, %p214
      %p216 = scmp.ne.s32.totalorder %s204, %s205
      %p217 = scmp.eq.s32.totalorder %s27, 1
      %p218 = por %p216, %p217
      %p220 = scmp.ne.s32.totalorder %s205, %s219
      %p221 = scmp.eq.s32.totalorder %s27, 0
      %p222 = por %p220, %p221
      %s224 = sadd.s32 %s223, 1
      %p227 = scmp.eq.s32.totalorder %s21, 1
      %p228 = scmp.ne.s32.totalorder %s223, %s225
      %p229 = scmp.eq.s32.totalorder %s21, 0
      %p230 = por %p228, %p229
      %p231 = scmp.ne.s32.totalorder %s223, %s225
      %p232 = scmp.eq.s32.totalorder %s26, 1
      %p233 = por %p231, %p232
      %p234 = scmp.ne.s32.totalorder %s225, %s226
      %p235 = scmp.eq.s32.totalorder %s26, 0
      %p236 = por %p234, %p235
      %p237 = scmp.ne.s32.totalorder %s225, %s226
      %p238 = scmp.eq.s32.totalorder %s27, 1
      %p239 = por %p237, %p238
      %p241 = scmp.ne.s32.totalorder %s226, %s240
      %p242 = scmp.eq.s32.totalorder %s27, 0
      %p243 = por %p241, %p242
      %s245 = sadd.s32 %s244, 1
      %p248 = scmp.eq.s32.totalorder %s21, 1
      %p249 = scmp.ne.s32.totalorder %s244, %s246
      %p250 = scmp.eq.s32.totalorder %s21, 0
      %p251 = por %p249, %p250
      %p252 = scmp.ne.s32.totalorder %s244, %s246
      %p253 = scmp.eq.s32.totalorder %s26, 1
      %p254 = por %p252, %p253
      %p255 = scmp.ne.s32.totalorder %s246, %s247
      %p256 = scmp.eq.s32.totalorder %s26, 0
      %p257 = por %p255, %p256
      %p258 = scmp.ne.s32.totalorder %s246, %s247
      %p259 = scmp.eq.s32.totalorder %s27, 1
      %p260 = por %p258, %p259
      %p262 = scmp.ne.s32.totalorder %s247, %s261
      %p263 = scmp.eq.s32.totalorder %s27, 0
      %p264 = por %p262, %p263
      %s266 = sadd.s32 %s265, 1
      %p269 = scmp.eq.s32.totalorder %s21, 1
      %p270 = scmp.ne.s32.totalorder %s265, %s267
      %p271 = scmp.eq.s32.totalorder %s21, 0
      %p272 = por %p270, %p271
      %p273 = scmp.ne.s32.totalorder %s265, %s267
      %p274 = scmp.eq.s32.totalorder %s26, 1
      %p275 = por %p273, %p274
      %p276 = scmp.ne.s32.totalorder %s267, %s268
      %p277 = scmp.eq.s32.totalorder %s26, 0
      %p278 = por %p276, %p277
      %p279 = scmp.ne.s32.totalorder %s267, %s268
      %p280 = scmp.eq.s32.totalorder %s27, 1
      %p281 = por %p279, %p280
      %p283 = scmp.ne.s32.totalorder %s268, %s282
      %p284 = scmp.eq.s32.totalorder %s27, 0
      %p285 = por %p283, %p284
      %s287 = sadd.s32 %s286, 1
      %p290 = scmp.eq.s32.totalorder %s21, 1
      %p291 = scmp.ne.s32.totalorder %s286, %s288
      %p292 = scmp.eq.s32.totalorder %s21, 0
      %p293 = por %p291, %p292
      %p294 = scmp.ne.s32.totalorder %s286, %s288
      %p295 = scmp.eq.s32.totalorder %s26, 1
      %p296 = por %p294, %p295
      %p297 = scmp.ne.s32.totalorder %s288, %s289
      %p298 = scmp.eq.s32.totalorder %s26, 0
      %p299 = por %p297, %p298
      %p300 = scmp.ne.s32.totalorder %s288, %s289
      %p301 = scmp.eq.s32.totalorder %s27, 1
      %p302 = por %p300, %p301
      %p304 = scmp.ne.s32.totalorder %s289, %s303
      %p305 = scmp.eq.s32.totalorder %s27, 0
      %p306 = por %p304, %p305
      %s307 = ssub.s32 %s21, %s28
      %p308 = scmp.eq.s32.totalorder %s307, 0
      %s310 = sadd.s32 %s309, 1
      %s311 = scalar_select %p308, %s309, %s310
      %p314 = pneg %p308
      %p315 = scmp.eq.s32.totalorder %s21, 1
      %p316 = por %p314, %p315
      %p317 = scmp.ne.s32.totalorder %s309, %s312
      %p318 = scmp.eq.s32.totalorder %s21, 0
      %p319 = por %p317, %p318
      %p320 = scmp.ne.s32.totalorder %s309, %s312
      %p321 = scmp.eq.s32.totalorder %s26, 1
      %p322 = por %p320, %p321
      %p323 = scmp.ne.s32.totalorder %s312, %s313
      %p324 = scmp.eq.s32.totalorder %s26, 0
      %p325 = por %p323, %p324
      %p326 = scmp.ne.s32.totalorder %s312, %s313
      %p327 = scmp.eq.s32.totalorder %s27, 1
      %p328 = por %p326, %p327
      %p330 = scmp.ne.s32.totalorder %s313, %s329
      %p331 = scmp.eq.s32.totalorder %s27, 0
      %p332 = por %p330, %p331
      %p333 = scmp.le.s32.totalorder 1, %s21
      %p334 = scmp.lt.s32.totalorder %s21, 3
      %p335 = pnand %p333, %p334
      %p336 = pneg %p335
      // Predicated region
      $region9: #{maniqa_forward.1} parent=5 // pred_check
        _
      $region10: #{maniqa_forward.1} parent=5 // pred_check_branch
        %338 = sbr.rel (%p335) target = $region12
      $region11: #{maniqa_forward.1} parent=5 // pred_region
        %s339 = ssub.s32 %s21, 1
        // Predicated region
        $region13: #{maniqa_forward.1} parent=11 // pred_check
          %p340 = pneg %p68
        $region14: #{maniqa_forward.1} parent=11 // pred_check_branch
          %342 = sbr.rel (%p340) target = $region16
        $region15: #{maniqa_forward.1} parent=11 // pred_region
          _
        $region16: #{maniqa_forward.1} parent=11 // pred_fallthru
          _
        // Predicated region
        $region17: #{maniqa_forward.1} parent=11 // pred_check
          %p343 = pneg %p89
        $region18: #{maniqa_forward.1} parent=11 // pred_check_branch
          %345 = sbr.rel (%p343) target = $region20
        $region19: #{maniqa_forward.1} parent=11 // pred_region
          _
        $region20: #{maniqa_forward.1} parent=11 // pred_fallthru
          _
        // Predicated region
        $region21: #{maniqa_forward.1} parent=11 // pred_check
          %p346 = pneg %p110
        $region22: #{maniqa_forward.1} parent=11 // pred_check_branch
          %348 = sbr.rel (%p346) target = $region24
        $region23: #{maniqa_forward.1} parent=11 // pred_region
          _
        $region24: #{maniqa_forward.1} parent=11 // pred_fallthru
          _
        // Predicated region
        $region25: #{maniqa_forward.1} parent=11 // pred_check
          %p349 = pneg %p131
        $region26: #{maniqa_forward.1} parent=11 // pred_check_branch
          %351 = sbr.rel (%p349) target = $region28
        $region27: #{maniqa_forward.1} parent=11 // pred_region
          _
        $region28: #{maniqa_forward.1} parent=11 // pred_fallthru
          _
        // Predicated region
        $region29: #{maniqa_forward.1} parent=11 // pred_check
          %p352 = pneg %p152
        $region30: #{maniqa_forward.1} parent=11 // pred_check_branch
          %354 = sbr.rel (%p352) target = $region32
        $region31: #{maniqa_forward.1} parent=11 // pred_region
          %356 = vsyncadd [#allocation3], 0
          %s357 = sshll.u32 %s5, 4
          %s358 = int_to_ptr.hbm [resolvable:$true] %s357
          %s359 = sshll.u32 [#allocation2], 4
          %s360 = int_to_ptr.vmem [resolvable:$true] %s359
          %365 = dma.hbm_to_vmem [thread:$0]  %s358, 1536, %s360, [#allocation3], 128, 128, 8
        $region32: #{maniqa_forward.1} parent=11 // pred_fallthru
          _
        // Predicated region
        $region33: #{maniqa_forward.1} parent=11 // pred_check
          %p366 = pneg %p173
        $region34: #{maniqa_forward.1} parent=11 // pred_check_branch
          %368 = sbr.rel (%p366) target = $region36
        $region35: #{maniqa_forward.1} parent=11 // pred_region
          _
        $region36: #{maniqa_forward.1} parent=11 // pred_fallthru
          _
        // Predicated region
        $region37: #{maniqa_forward.1} parent=11 // pred_check
          %p369 = pneg %p194
        $region38: #{maniqa_forward.1} parent=11 // pred_check_branch
          %371 = sbr.rel (%p369) target = $region40
        $region39: #{maniqa_forward.1} parent=11 // pred_region
          _
        $region40: #{maniqa_forward.1} parent=11 // pred_fallthru
          _
        // Predicated region
        $region41: #{maniqa_forward.1} parent=11 // pred_check
          %p372 = pneg %p215
        $region42: #{maniqa_forward.1} parent=11 // pred_check_branch
          %374 = sbr.rel (%p372) target = $region44
        $region43: #{maniqa_forward.1} parent=11 // pred_region
          _
        $region44: #{maniqa_forward.1} parent=11 // pred_fallthru
          _
        // Predicated region
        $region45: #{maniqa_forward.1} parent=11 // pred_check
          %p375 = pneg %p236
        $region46: #{maniqa_forward.1} parent=11 // pred_check_branch
          %377 = sbr.rel (%p375) target = $region48
        $region47: #{maniqa_forward.1} parent=11 // pred_region
          %379 = vsyncadd [#allocation5], 0
          %s381 = sshll.u32 %s9, 4
          %s382 = int_to_ptr.hbm [resolvable:$true] %s381
          %s383 = sshll.u32 [#allocation4], 4
          %s384 = int_to_ptr.vmem [resolvable:$true] %s383
          %386 = dma.hbm_to_vmem [thread:$0]  %s382, 64, %s384, [#allocation5]
        $region48: #{maniqa_forward.1} parent=11 // pred_fallthru
          _
        // Predicated region
        $region49: #{maniqa_forward.1} parent=11 // pred_check
          %p387 = pneg %p257
        $region50: #{maniqa_forward.1} parent=11 // pred_check_branch
          %389 = sbr.rel (%p387) target = $region52
        $region51: #{maniqa_forward.1} parent=11 // pred_region
          _
        $region52: #{maniqa_forward.1} parent=11 // pred_fallthru
          _
        // Predicated region
        $region53: #{maniqa_forward.1} parent=11 // pred_check
          %p390 = pneg %p278
        $region54: #{maniqa_forward.1} parent=11 // pred_check_branch
          %392 = sbr.rel (%p390) target = $region56
        $region55: #{maniqa_forward.1} parent=11 // pred_region
          _
        $region56: #{maniqa_forward.1} parent=11 // pred_fallthru
          _
        // Predicated region
        $region57: #{maniqa_forward.1} parent=11 // pred_check
          %p393 = pneg %p299
        $region58: #{maniqa_forward.1} parent=11 // pred_check_branch
          %395 = sbr.rel (%p393) target = $region60
        $region59: #{maniqa_forward.1} parent=11 // pred_region
          _
        $region60: #{maniqa_forward.1} parent=11 // pred_fallthru
          _
      $region12: #{maniqa_forward.1} parent=5 // pred_fallthru
        _
      %p396 = scmp.lt.s32.totalorder %s21, 2
      // Predicated region
      $region61: #{maniqa_forward.1} parent=5 // pred_check
        %p397 = pneg %p396
      $region62: #{maniqa_forward.1} parent=5 // pred_check_branch
        %399 = sbr.rel (%p397) target = $region64
      $region63: #{maniqa_forward.1} parent=5 // pred_region
        // Predicated region
        $region65: #{maniqa_forward.1} parent=63 // pred_check
          %p400 = pneg %p41
        $region66: #{maniqa_forward.1} parent=63 // pred_check_branch
          %402 = sbr.rel (%p400) target = $region68
        $region67: #{maniqa_forward.1} parent=63 // pred_region
          %p403 = scmp.lt.s32.totalorder %s21, 1
          %s404 = scalar_select %p403, %s21, 1
          %s405 = smul.addr %s404, 4
          %s406 = smul.addr %s405, 8
          %s407 = scalar_lea.vmem %s0, %s406
        $region68: #{maniqa_forward.1} parent=63 // pred_fallthru
          _
      $region64: #{maniqa_forward.1} parent=5 // pred_fallthru
        _
      %p408 = scmp.le.s32.totalorder 1, %s21
      %p409 = scmp.lt.s32.totalorder %s21, 3
      %p410 = pnand %p408, %p409
      %p411 = pneg %p410
      // Predicated region
      $region69: #{maniqa_forward.1} parent=5 // pred_check
        _
      $region70: #{maniqa_forward.1} parent=5 // pred_check_branch
        %413 = sbr.rel (%p410) target = $region72
      $region71: #{maniqa_forward.1} parent=5 // pred_region
        %s414 = ssub.s32 %s21, 1
        // Predicated region
        $region73: #{maniqa_forward.1} parent=71 // pred_check
          %p415 = pneg %p152
        $region74: #{maniqa_forward.1} parent=71 // pred_check_branch
          %417 = sbr.rel (%p415) target = $region76
        $region75: #{maniqa_forward.1} parent=71 // pred_region
          %419 = dma.done [#allocation3], 1536
        $region76: #{maniqa_forward.1} parent=71 // pred_fallthru
          _
        // Predicated region
        $region77: #{maniqa_forward.1} parent=71 // pred_check
          %p420 = pneg %p236
        $region78: #{maniqa_forward.1} parent=71 // pred_check_branch
          %422 = sbr.rel (%p420) target = $region80
        $region79: #{maniqa_forward.1} parent=71 // pred_region
          %424 = dma.done [#allocation5], 64
        $region80: #{maniqa_forward.1} parent=71 // pred_fallthru
          _
        %p425 = scmp.lt.s32.totalorder %s26, 1
        %s426 = scalar_select %p425, %s26, 1
        %s427 = smul.addr %s426, 4
        %s428 = smul.addr %s427, 8
        %s429 = scalar_lea.vmem %s0, %s428
        %p430 = pneg %p47
        %p431 = pneg %p44
        %p432 = pneg %p68
        %p433 = pneg %p65
        %p434 = pneg %p89
        %p435 = pneg %p86
        %p436 = pneg %p110
        %p437 = pneg %p107
        %p438 = pneg %p131
        %p439 = pneg %p128
        %p440 = pneg %p152
        %p441 = pneg %p149
        %p442 = pneg %p173
        %p443 = pneg %p170
        %p444 = pneg %p194
        %p445 = pneg %p191
        %p446 = pneg %p215
        %p447 = pneg %p212
        %p448 = pneg %p236
        %p449 = pneg %p233
        %p450 = pneg %p257
        %p451 = pneg %p254
        %p452 = pneg %p278
        %p453 = pneg %p275
        %p454 = pneg %p299
        %p455 = pneg %p296
        %p456 = pneg %p325
        %p457 = pneg %p322
        %p458 = scmp.lt.s32.totalorder %s26, 1
        %s459 = scalar_select %p458, %s26, 1
        %s460 = smul.addr %s459, 8
        %s461 = scalar_lea.vmem %s13, %s460
        %p462 = scmp.lt.s32.totalorder %s26, 1
        %s463 = scalar_select %p462, %s26, 1
        %s464 = smul.addr %s463, 4
        %s465 = smul.addr %s464, 8
        %s466 = scalar_lea.vmem %s0, %s465
        %p467 = scmp.lt.s32.totalorder %s26, 1
        %s468 = scalar_select %p467, %s26, 1
        %s469 = smul.addr %s468, 8
        %s470 = scalar_lea.vmem %s13, %s469
        %v471 = vld [vmem:[%s466] sm:$0xff]
        %v472 = vld [vmem:[%s466 + $0x8] sm:$0xff]
        %v473 = vld [vmem:[%s466 + $0x10] sm:$0xff]
        %v474 = vld [vmem:[%s466 + $0x18] sm:$0xff]
        %v475 = vlaneseq
        %v476 = vshrl.u32 %v475, 7
        %v477 = vadd.s32 %v476, 8
        %v478 = vadd.s32 %v476, 16
        %v479 = vadd.s32 %v476, 24
        %v480 = vlaneseq
        %v481 = vand.u32 %v480, 127
        %v482 = vmul.u32 %v481, 2
        %vm483 = vcmp.eq.s32.totalorder %v476, %v482
        %vm484 = vcmp.eq.s32.totalorder %v477, %v482
        %vm485 = vcmp.eq.s32.totalorder %v478, %v482
        %vm486 = vcmp.eq.s32.totalorder %v479, %v482
        %v487 = vsel %vm483, 1, 0
        %v488 = vsel %vm484, 1, 0
        %v489 = vsel %vm485, 1, 0
        %v490 = vsel %vm486, 1, 0
        %v491 = vcvt.s32.f32 %v487
        %v492 = vcvt.s32.f32 %v488
        %v493 = vcvt.s32.f32 %v489
        %v494 = vcvt.s32.f32 %v490
        %v495 = vadd.s32 %v482, 1
        %vm496 = vcmp.eq.s32.totalorder %v476, %v495
        %vm497 = vcmp.eq.s32.totalorder %v477, %v495
        %vm498 = vcmp.eq.s32.totalorder %v478, %v495
        %vm499 = vcmp.eq.s32.totalorder %v479, %v495
        %v500 = vsel %vm496, 1, 0
        %v501 = vsel %vm497, 1, 0
        %v502 = vsel %vm498, 1, 0
        %v503 = vsel %vm499, 1, 0
        %v504 = vcvt.s32.f32 %v500
        %v505 = vcvt.s32.f32 %v501
        %v506 = vcvt.s32.f32 %v502
        %v507 = vcvt.s32.f32 %v503
        %v508 = vmul.u32 %v476, 2
        %vm509 = vcmp.eq.s32.totalorder %v481, %v508
        %v510 = vsel %vm509, 1, 0
        %v511 = vcvt.s32.f32 %v510
        %v512 = vadd.s32 %v508, 1
        %vm513 = vcmp.eq.s32.totalorder %v481, %v512
        %v514 = vsel %vm513, 1, 0
        %v515 = vcvt.s32.f32 %v514
        %v516 = vld [vmem:[%s1] sm:$0xff]
        %v517 = vld [vmem:[%s1 + $0x8] sm:$0xff]
        %v518 = vld [vmem:[%s2] sm:$0x1]
        %v520 = vperm.slane %v518, 0
        %vm522 = vcmask 130048
        %v524 = vsel %vm522, %v471, 0
        %v527 = vsel %vm522, %v472, 0
        %v530 = vsel %vm522, %v473, 0
        %v533 = vsel %vm522, %v474, 0
        %535 = vmatpush.msra.mxu0 0.0
        %536 = vmatpush.msra.mxu0 0.0
        %537 = vmatpush.msra.mxu0 0.0
        %538 = vmatpush.msra.mxu0 0.0
        %539 = vmatpush.msra.mxu0 0.0
        %540 = vmatpush.msra.mxu0 0.0
        %541 = vmatpush.msra.mxu0 0.0
        %542 = vmatpush.msra.mxu0 0.0
        %543 = vmatpush.msra.mxu0 0.0
        %544 = vmatpush.msra.mxu0 0.0
        %545 = vmatpush.msra.mxu0 0.0
        %546 = vmatpush.msra.mxu0 0.0
        %547 = vmatpush.msra.mxu0 0.0
        %548 = vmatpush.msra.mxu0 0.0
        %549 = vmatpush.msra.mxu0 %v517
        %550 = vmatpush.msra.mxu0 %v516
        %551 = vmatmul.f32.gmra.mxu0 %v524
        %v552 = vpop.f32.mrf.mxu0
        %v553 = vadd.f32 %v520, %v552
        %554 = vmatmul.f32.gmra.mxu0 %v527
        %v555 = vpop.f32.mrf.mxu0
        %v556 = vadd.f32 %v520, %v555
        %557 = vmatmul.f32.gmra.mxu0 %v530
        %v558 = vpop.f32.mrf.mxu0
        %v559 = vadd.f32 %v520, %v558
        %560 = vmatmul.f32.gmra.mxu0 %v533
        %v561 = vpop.f32.mrf.mxu0
        %v562 = vadd.f32 %v520, %v561
        %563 = vdwg.mxu0
        %s564 = scalar_lea.vmem %s1, 16
        %v565 = vld [vmem:[%s564] sm:$0xff]
        %v566 = vld [vmem:[%s564 + $0x8] sm:$0xff]
        %s567 = scalar_lea.vmem %s2, 1
        %v568 = vld [vmem:[%s567] sm:$0x1]
        %v570 = vperm.slane %v568, 0
        %572 = vmatpush.msra.mxu0 0.0
        %573 = vmatpush.msra.mxu0 0.0
        %574 = vmatpush.msra.mxu0 0.0
        %575 = vmatpush.msra.mxu0 0.0
        %576 = vmatpush.msra.mxu0 0.0
        %577 = vmatpush.msra.mxu0 0.0
        %578 = vmatpush.msra.mxu0 0.0
        %579 = vmatpush.msra.mxu0 0.0
        %580 = vmatpush.msra.mxu0 0.0
        %581 = vmatpush.msra.mxu0 0.0
        %582 = vmatpush.msra.mxu0 0.0
        %583 = vmatpush.msra.mxu0 0.0
        %584 = vmatpush.msra.mxu0 0.0
        %585 = vmatpush.msra.mxu0 0.0
        %586 = vmatpush.msra.mxu0 %v566
        %587 = vmatpush.msra.mxu0 %v565
        %588 = vmatmul.f32.gmra.mxu0 %v524
        %v589 = vpop.f32.mrf.mxu0
        %v590 = vadd.f32 %v570, %v589
        %591 = vmatmul.f32.gmra.mxu0 %v527
        %v592 = vpop.f32.mrf.mxu0
        %v593 = vadd.f32 %v570, %v592
        %594 = vmatmul.f32.gmra.mxu0 %v530
        %v595 = vpop.f32.mrf.mxu0
        %v596 = vadd.f32 %v570, %v595
        %597 = vmatmul.f32.gmra.mxu0 %v533
        %v598 = vpop.f32.mrf.mxu0
        %v599 = vadd.f32 %v570, %v598
        %600 = vdwg.mxu0
        %s601 = scalar_lea.vmem %s1, 32
        %v602 = vld [vmem:[%s601] sm:$0xff]
        %v603 = vld [vmem:[%s601 + $0x8] sm:$0xff]
        %s604 = scalar_lea.vmem %s2, 2
        %v605 = vld [vmem:[%s604] sm:$0x1]
        %v607 = vperm.slane %v605, 0
        %609 = vmatpush.msra.mxu0 0.0
        %610 = vmatpush.msra.mxu0 0.0
        %611 = vmatpush.msra.mxu0 0.0
        %612 = vmatpush.msra.mxu0 0.0
        %613 = vmatpush.msra.mxu0 0.0
        %614 = vmatpush.msra.mxu0 0.0
        %615 = vmatpush.msra.mxu0 0.0
        %616 = vmatpush.msra.mxu0 0.0
        %617 = vmatpush.msra.mxu0 0.0
        %618 = vmatpush.msra.mxu0 0.0
        %619 = vmatpush.msra.mxu0 0.0
        %620 = vmatpush.msra.mxu0 0.0
        %621 = vmatpush.msra.mxu0 0.0
        %622 = vmatpush.msra.mxu0 0.0
        %623 = vmatpush.msra.mxu0 %v603
        %624 = vmatpush.msra.mxu0 %v602
        %625 = vmatmul.f32.gmra.mxu0 %v524
        %v626 = vpop.f32.mrf.mxu0
        %v627 = vadd.f32 %v607, %v626
        %628 = vmatmul.f32.gmra.mxu0 %v527
        %v629 = vpop.f32.mrf.mxu0
        %v630 = vadd.f32 %v607, %v629
        %631 = vmatmul.f32.gmra.mxu0 %v530
        %v632 = vpop.f32.mrf.mxu0
        %v633 = vadd.f32 %v607, %v632
        %634 = vmatmul.f32.gmra.mxu0 %v533
        %v635 = vpop.f32.mrf.mxu0
        %v636 = vadd.f32 %v607, %v635
        %637 = vdwg.mxu0
        %v639 = vsel %vm522, %v553, 0
        %v642 = vsel %vm522, %v556, 0
        %v645 = vsel %vm522, %v559, 0
        %v648 = vsel %vm522, %v562, 0
        %v651 = vsel %vm522, %v590, 0
        %v654 = vsel %vm522, %v593, 0
        %v657 = vsel %vm522, %v596, 0
        %v660 = vsel %vm522, %v599, 0
        %662 = vmatpush.xpose.msra.mxu0 0.0
        %663 = vmatpush.xpose.msra.mxu0 0.0
        %664 = vmatpush.xpose.msra.mxu0 0.0
        %665 = vmatpush.xpose.msra.mxu0 0.0
        %666 = vmatpush.xpose.msra.mxu0 0.0
        %667 = vmatpush.xpose.msra.mxu0 0.0
        %668 = vmatpush.xpose.msra.mxu0 0.0
        %669 = vmatpush.xpose.msra.mxu0 0.0
        %670 = vmatpush.xpose.msra.mxu0 0.0
        %671 = vmatpush.xpose.msra.mxu0 0.0
        %672 = vmatpush.xpose.msra.mxu0 0.0
        %673 = vmatpush.xpose.msra.mxu0 0.0
        %674 = vmatpush.xpose.msra.mxu0 %v660
        %675 = vmatpush.xpose.msra.mxu0 %v657
        %676 = vmatpush.xpose.msra.mxu0 %v654
        %677 = vmatpush.xpose.msra.mxu0 %v651
        %678 = vmatmul.f32.gmra.mxu0 %v639
        %v679 = vpop.f32.mrf.mxu0
        %v680 = vadd.f32 0.0, %v679
        %681 = vmatmul.f32.gmra.mxu0 %v642
        %v682 = vpop.f32.mrf.mxu0
        %v683 = vadd.f32 0.0, %v682
        %684 = vmatmul.f32.gmra.mxu0 %v645
        %v685 = vpop.f32.mrf.mxu0
        %v686 = vadd.f32 0.0, %v685
        %687 = vmatmul.f32.gmra.mxu0 %v648
        %v688 = vpop.f32.mrf.mxu0
        %v689 = vadd.f32 0.0, %v688
        %690 = vdwg.mxu0
        %v691 = vmul.f32 %v680, 0.25
        %v692 = vmul.f32 %v683, 0.25
        %v693 = vmul.f32 %v686, 0.25
        %v694 = vmul.f32 %v689, 0.25
        %vm695 = vcmask 261120
        %v696 = vsel %vm695, %v691, -inf
        %697 = vmax.xlane.f32.xlu0 %v696
        %v698 = vpop.xlane.xlu0 %697
        %v699 = vsel %vm695, %v692, -inf
        %700 = vmax.xlane.f32.xlu0 %v699
        %v701 = vpop.xlane.xlu0 %700
        %v702 = vsel %vm695, %v693, -inf
        %703 = vmax.xlane.f32.xlu0 %v702
        %v704 = vpop.xlane.xlu0 %703
        %v705 = vsel %vm695, %v694, -inf
        %706 = vmax.xlane.f32.xlu0 %v705
        %v707 = vpop.xlane.xlu0 %706
        %v708 = vsub.f32 %v691, %v698
        %v709 = vsub.f32 %v692, %v701
        %v710 = vsub.f32 %v693, %v704
        %v711 = vsub.f32 %v694, %v707
        %v712 = vmul.f32 %v708, 1.442695
        %v713 = vpow.pop %v712
        %v714 = vmul.f32 %v709, 1.442695
        %v715 = vpow.pop %v714
        %v716 = vmul.f32 %v710, 1.442695
        %v717 = vpow.pop %v716
        %v718 = vmul.f32 %v711, 1.442695
        %v719 = vpow.pop %v718
        %v720 = vsel %vm695, %v713, 0.0
        %721 = vadd.xlane.f32.xlu0 %v720
        %v722 = vpop.xlane.xlu0 %721
        %v723 = vsel %vm695, %v715, 0.0
        %724 = vadd.xlane.f32.xlu0 %v723
        %v725 = vpop.xlane.xlu0 %724
        %v726 = vsel %vm695, %v717, 0.0
        %727 = vadd.xlane.f32.xlu0 %v726
        %v728 = vpop.xlane.xlu0 %727
        %v729 = vsel %vm695, %v719, 0.0
        %730 = vadd.xlane.f32.xlu0 %v729
        %v731 = vpop.xlane.xlu0 %730
        %v732 = vrcp.pop %v722
        %v733 = vrcp.pop %v725
        %v734 = vrcp.pop %v728
        %v735 = vrcp.pop %v731
        %v736 = vmul.f32 %v713, %v732
        %v737 = vmul.f32 %v715, %v733
        %v738 = vmul.f32 %v717, %v734
        %v739 = vmul.f32 %v719, %v735
        %v741 = vsel %vm695, %v736, 0
        %v744 = vsel %vm695, %v737, 0
        %v747 = vsel %vm695, %v738, 0
        %v750 = vsel %vm695, %v739, 0
        %752 = vmatpush.msra.mxu0 0.0
        %753 = vmatpush.msra.mxu0 0.0
        %754 = vmatpush.msra.mxu0 0.0
        %755 = vmatpush.msra.mxu0 0.0
        %756 = vmatpush.msra.mxu0 0.0
        %757 = vmatpush.msra.mxu0 0.0
        %758 = vmatpush.msra.mxu0 0.0
        %759 = vmatpush.msra.mxu0 0.0
        %760 = vmatpush.msra.mxu0 0.0
        %761 = vmatpush.msra.mxu0 0.0
        %762 = vmatpush.msra.mxu0 0.0
        %763 = vmatpush.msra.mxu0 0.0
        %764 = vmatpush.msra.mxu0 %v636
        %765 = vmatpush.msra.mxu0 %v633
        %766 = vmatpush.msra.mxu0 %v630
        %767 = vmatpush.msra.mxu0 %v627
        %768 = vmatmul.f32.gmra.mxu0 %v741
        %v769 = vpop.f32.mrf.mxu0
        %v770 = vadd.f32 0.0, %v769
        %771 = vmatmul.f32.gmra.mxu0 %v744
        %v772 = vpop.f32.mrf.mxu0
        %v773 = vadd.f32 0.0, %v772
        %774 = vmatmul.f32.gmra.mxu0 %v747
        %v775 = vpop.f32.mrf.mxu0
        %v776 = vadd.f32 0.0, %v775
        %777 = vmatmul.f32.gmra.mxu0 %v750
        %v778 = vpop.f32.mrf.mxu0
        %v779 = vadd.f32 0.0, %v778
        %780 = vdwg.mxu0
        %v782 = vsel %vm522, %v504, 0
        %v785 = vsel %vm522, %v505, 0
        %v788 = vsel %vm522, %v506, 0
        %v791 = vsel %vm522, %v507, 0
        %v794 = vsel %vm522, %v776, 0
        %v797 = vsel %vm522, %v779, 0
        %799 = vmatpush.xpose.msra.mxu0 0.0
        %800 = vmatpush.xpose.msra.mxu0 0.0
        %801 = vmatpush.xpose.msra.mxu0 0.0
        %802 = vmatpush.xpose.msra.mxu0 0.0
        %803 = vmatpush.xpose.msra.mxu0 0.0
        %804 = vmatpush.xpose.msra.mxu0 0.0
        %805 = vmatpush.xpose.msra.mxu0 0.0
        %806 = vmatpush.xpose.msra.mxu0 0.0
        %807 = vmatpush.xpose.msra.mxu0 0.0
        %808 = vmatpush.xpose.msra.mxu0 0.0
        %809 = vmatpush.xpose.msra.mxu0 0.0
        %810 = vmatpush.xpose.msra.mxu0 0.0
        %811 = vmatpush.xpose.msra.mxu0 0.0
        %812 = vmatpush.xpose.msra.mxu0 0.0
        %813 = vmatpush.xpose.msra.mxu0 %v797
        %814 = vmatpush.xpose.msra.mxu0 %v794
        %815 = vmatmul.f32.gmra.mxu0 %v782
        %v816 = vpop.f32.mrf.mxu0
        %v817 = vadd.f32 0.0, %v816
        %818 = vmatmul.f32.gmra.mxu0 %v785
        %v819 = vpop.f32.mrf.mxu0
        %v820 = vadd.f32 0.0, %v819
        %821 = vmatmul.f32.gmra.mxu0 %v788
        %v822 = vpop.f32.mrf.mxu0
        %v823 = vadd.f32 0.0, %v822
        %824 = vmatmul.f32.gmra.mxu0 %v791
        %v825 = vpop.f32.mrf.mxu0
        %v826 = vadd.f32 0.0, %v825
        %827 = vdwg.mxu0
        %v829 = vsel %vm522, %v491, 0
        %v832 = vsel %vm522, %v492, 0
        %v835 = vsel %vm522, %v493, 0
        %v838 = vsel %vm522, %v494, 0
        %v841 = vsel %vm522, %v770, 0
        %v844 = vsel %vm522, %v773, 0
        %846 = vmatpush.xpose.msra.mxu0 0.0
        %847 = vmatpush.xpose.msra.mxu0 0.0
        %848 = vmatpush.xpose.msra.mxu0 0.0
        %849 = vmatpush.xpose.msra.mxu0 0.0
        %850 = vmatpush.xpose.msra.mxu0 0.0
        %851 = vmatpush.xpose.msra.mxu0 0.0
        %852 = vmatpush.xpose.msra.mxu0 0.0
        %853 = vmatpush.xpose.msra.mxu0 0.0
        %854 = vmatpush.xpose.msra.mxu0 0.0
        %855 = vmatpush.xpose.msra.mxu0 0.0
        %856 = vmatpush.xpose.msra.mxu0 0.0
        %857 = vmatpush.xpose.msra.mxu0 0.0
        %858 = vmatpush.xpose.msra.mxu0 0.0
        %859 = vmatpush.xpose.msra.mxu0 0.0
        %860 = vmatpush.xpose.msra.mxu0 %v844
        %861 = vmatpush.xpose.msra.mxu0 %v841
        %862 = vmatmul.f32.gmra.mxu0 %v829
        %v863 = vpop.f32.mrf.mxu0
        %v864 = vadd.f32 %v817, %v863
        %865 = vmatmul.f32.gmra.mxu0 %v832
        %v866 = vpop.f32.mrf.mxu0
        %v867 = vadd.f32 %v820, %v866
        %868 = vmatmul.f32.gmra.mxu0 %v835
        %v869 = vpop.f32.mrf.mxu0
        %v870 = vadd.f32 %v823, %v869
        %871 = vmatmul.f32.gmra.mxu0 %v838
        %v872 = vpop.f32.mrf.mxu0
        %v873 = vadd.f32 %v826, %v872
        %874 = vdwg.mxu0
        %v875 = vadd.f32 %v471, %v864
        %v876 = vadd.f32 %v472, %v867
        %v877 = vadd.f32 %v473, %v870
        %v878 = vadd.f32 %v474, %v873
        %s879 = scalar_lea.vmem %s1, 48
        %v880 = vld [vmem:[%s879] sm:$0xff]
        %v881 = vld [vmem:[%s879 + $0x8] sm:$0xff]
        %s882 = scalar_lea.vmem %s2, 3
        %v883 = vld [vmem:[%s882] sm:$0x1]
        %v885 = vperm.slane %v883, 0
        %v888 = vsel %vm522, %v875, 0
        %v891 = vsel %vm522, %v876, 0
        %v894 = vsel %vm522, %v877, 0
        %v897 = vsel %vm522, %v878, 0
        %899 = vmatpush.msra.mxu0 0.0
        %900 = vmatpush.msra.mxu0 0.0
        %901 = vmatpush.msra.mxu0 0.0
        %902 = vmatpush.msra.mxu0 0.0
        %903 = vmatpush.msra.mxu0 0.0
        %904 = vmatpush.msra.mxu0 0.0
        %905 = vmatpush.msra.mxu0 0.0
        %906 = vmatpush.msra.mxu0 0.0
        %907 = vmatpush.msra.mxu0 0.0
        %908 = vmatpush.msra.mxu0 0.0
        %909 = vmatpush.msra.mxu0 0.0
        %910 = vmatpush.msra.mxu0 0.0
        %911 = vmatpush.msra.mxu0 0.0
        %912 = vmatpush.msra.mxu0 0.0
        %913 = vmatpush.msra.mxu0 %v881
        %914 = vmatpush.msra.mxu0 %v880
        %915 = vmatmul.f32.gmra.mxu0 %v888
        %v916 = vpop.f32.mrf.mxu0
        %v917 = vadd.f32 %v885, %v916
        %918 = vmatmul.f32.gmra.mxu0 %v891
        %v919 = vpop.f32.mrf.mxu0
        %v920 = vadd.f32 %v885, %v919
        %921 = vmatmul.f32.gmra.mxu0 %v894
        %v922 = vpop.f32.mrf.mxu0
        %v923 = vadd.f32 %v885, %v922
        %924 = vmatmul.f32.gmra.mxu0 %v897
        %v925 = vpop.f32.mrf.mxu0
        %v926 = vadd.f32 %v885, %v925
        %927 = vdwg.mxu0
        %s928 = scalar_lea.vmem %s1, 64
        %v929 = vld [vmem:[%s928] sm:$0xff]
        %v930 = vld [vmem:[%s928 + $0x8] sm:$0xff]
        %s931 = scalar_lea.vmem %s2, 4
        %v932 = vld [vmem:[%s931] sm:$0x1]
        %v934 = vperm.slane %v932, 0
        %936 = vmatpush.msra.mxu0 0.0
        %937 = vmatpush.msra.mxu0 0.0
        %938 = vmatpush.msra.mxu0 0.0
        %939 = vmatpush.msra.mxu0 0.0
        %940 = vmatpush.msra.mxu0 0.0
        %941 = vmatpush.msra.mxu0 0.0
        %942 = vmatpush.msra.mxu0 0.0
        %943 = vmatpush.msra.mxu0 0.0
        %944 = vmatpush.msra.mxu0 0.0
        %945 = vmatpush.msra.mxu0 0.0
        %946 = vmatpush.msra.mxu0 0.0
        %947 = vmatpush.msra.mxu0 0.0
        %948 = vmatpush.msra.mxu0 0.0
        %949 = vmatpush.msra.mxu0 0.0
        %950 = vmatpush.msra.mxu0 %v930
        %951 = vmatpush.msra.mxu0 %v929
        %952 = vmatmul.f32.gmra.mxu0 %v888
        %v953 = vpop.f32.mrf.mxu0
        %v954 = vadd.f32 %v934, %v953
        %955 = vmatmul.f32.gmra.mxu0 %v891
        %v956 = vpop.f32.mrf.mxu0
        %v957 = vadd.f32 %v934, %v956
        %958 = vmatmul.f32.gmra.mxu0 %v894
        %v959 = vpop.f32.mrf.mxu0
        %v960 = vadd.f32 %v934, %v959
        %961 = vmatmul.f32.gmra.mxu0 %v897
        %v962 = vpop.f32.mrf.mxu0
        %v963 = vadd.f32 %v934, %v962
        %964 = vdwg.mxu0
        %s965 = scalar_lea.vmem %s1, 80
        %v966 = vld [vmem:[%s965] sm:$0xff]
        %v967 = vld [vmem:[%s965 + $0x8] sm:$0xff]
        %s968 = scalar_lea.vmem %s2, 5
        %v969 = vld [vmem:[%s968] sm:$0x1]
        %v971 = vperm.slane %v969, 0
        %973 = vmatpush.msra.mxu0 0.0
        %974 = vmatpush.msra.mxu0 0.0
        %975 = vmatpush.msra.mxu0 0.0
        %976 = vmatpush.msra.mxu0 0.0
        %977 = vmatpush.msra.mxu0 0.0
        %978 = vmatpush.msra.mxu0 0.0
        %979 = vmatpush.msra.mxu0 0.0
        %980 = vmatpush.msra.mxu0 0.0
        %981 = vmatpush.msra.mxu0 0.0
        %982 = vmatpush.msra.mxu0 0.0
        %983 = vmatpush.msra.mxu0 0.0
        %984 = vmatpush.msra.mxu0 0.0
        %985 = vmatpush.msra.mxu0 0.0
        %986 = vmatpush.msra.mxu0 0.0
        %987 = vmatpush.msra.mxu0 %v967
        %988 = vmatpush.msra.mxu0 %v966
        %989 = vmatmul.f32.gmra.mxu0 %v888
        %v990 = vpop.f32.mrf.mxu0
        %v991 = vadd.f32 %v971, %v990
        %992 = vmatmul.f32.gmra.mxu0 %v891
        %v993 = vpop.f32.mrf.mxu0
        %v994 = vadd.f32 %v971, %v993
        %995 = vmatmul.f32.gmra.mxu0 %v894
        %v996 = vpop.f32.mrf.mxu0
        %v997 = vadd.f32 %v971, %v996
        %998 = vmatmul.f32.gmra.mxu0 %v897
        %v999 = vpop.f32.mrf.mxu0
        %v1000 = vadd.f32 %v971, %v999
        %1001 = vdwg.mxu0
        %v1003 = vsel %vm522, %v917, 0
        %v1006 = vsel %vm522, %v920, 0
        %v1009 = vsel %vm522, %v923, 0
        %v1012 = vsel %vm522, %v926, 0
        %v1015 = vsel %vm522, %v954, 0
        %v1018 = vsel %vm522, %v957, 0
        %v1021 = vsel %vm522, %v960, 0
        %v1024 = vsel %vm522, %v963, 0
        %1026 = vmatpush.xpose.msra.mxu0 0.0
        %1027 = vmatpush.xpose.msra.mxu0 0.0
        %1028 = vmatpush.xpose.msra.mxu0 0.0
        %1029 = vmatpush.xpose.msra.mxu0 0.0
        %1030 = vmatpush.xpose.msra.mxu0 0.0
        %1031 = vmatpush.xpose.msra.mxu0 0.0
        %1032 = vmatpush.xpose.msra.mxu0 0.0
        %1033 = vmatpush.xpose.msra.mxu0 0.0
        %1034 = vmatpush.xpose.msra.mxu0 0.0
        %1035 = vmatpush.xpose.msra.mxu0 0.0
        %1036 = vmatpush.xpose.msra.mxu0 0.0
        %1037 = vmatpush.xpose.msra.mxu0 0.0
        %1038 = vmatpush.xpose.msra.mxu0 %v1024
        %1039 = vmatpush.xpose.msra.mxu0 %v1021
        %1040 = vmatpush.xpose.msra.mxu0 %v1018
        %1041 = vmatpush.xpose.msra.mxu0 %v1015
        %1042 = vmatmul.f32.gmra.mxu0 %v1003
        %v1043 = vpop.f32.mrf.mxu0
        %v1044 = vadd.f32 0.0, %v1043
        %1045 = vmatmul.f32.gmra.mxu0 %v1006
        %v1046 = vpop.f32.mrf.mxu0
        %v1047 = vadd.f32 0.0, %v1046
        %1048 = vmatmul.f32.gmra.mxu0 %v1009
        %v1049 = vpop.f32.mrf.mxu0
        %v1050 = vadd.f32 0.0, %v1049
        %1051 = vmatmul.f32.gmra.mxu0 %v1012
        %v1052 = vpop.f32.mrf.mxu0
        %v1053 = vadd.f32 0.0, %v1052
        %1054 = vdwg.mxu0
        %v1055 = vmul.f32 %v1044, 0.25
        %v1056 = vmul.f32 %v1047, 0.25
        %v1057 = vmul.f32 %v1050, 0.25
        %v1058 = vmul.f32 %v1053, 0.25
        %v1059 = vsel %vm695, %v1055, -inf
        %1060 = vmax.xlane.f32.xlu0 %v1059
        %v1061 = vpop.xlane.xlu0 %1060
        %v1062 = vsel %vm695, %v1056, -inf
        %1063 = vmax.xlane.f32.xlu0 %v1062
        %v1064 = vpop.xlane.xlu0 %1063
        %v1065 = vsel %vm695, %v1057, -inf
        %1066 = vmax.xlane.f32.xlu0 %v1065
        %v1067 = vpop.xlane.xlu0 %1066
        %v1068 = vsel %vm695, %v1058, -inf
        %1069 = vmax.xlane.f32.xlu0 %v1068
        %v1070 = vpop.xlane.xlu0 %1069
        %v1071 = vsub.f32 %v1055, %v1061
        %v1072 = vsub.f32 %v1056, %v1064
        %v1073 = vsub.f32 %v1057, %v1067
        %v1074 = vsub.f32 %v1058, %v1070
        %v1075 = vmul.f32 %v1071, 1.442695
        %v1076 = vpow.pop %v1075
        %v1077 = vmul.f32 %v1072, 1.442695
        %v1078 = vpow.pop %v1077
        %v1079 = vmul.f32 %v1073, 1.442695
        %v1080 = vpow.pop %v1079
        %v1081 = vmul.f32 %v1074, 1.442695
        %v1082 = vpow.pop %v1081
        %v1083 = vsel %vm695, %v1076, 0.0
        %1084 = vadd.xlane.f32.xlu0 %v1083
        %v1085 = vpop.xlane.xlu0 %1084
        %v1086 = vsel %vm695, %v1078, 0.0
        %1087 = vadd.xlane.f32.xlu0 %v1086
        %v1088 = vpop.xlane.xlu0 %1087
        %v1089 = vsel %vm695, %v1080, 0.0
        %1090 = vadd.xlane.f32.xlu0 %v1089
        %v1091 = vpop.xlane.xlu0 %1090
        %v1092 = vsel %vm695, %v1082, 0.0
        %1093 = vadd.xlane.f32.xlu0 %v1092
        %v1094 = vpop.xlane.xlu0 %1093
        %v1095 = vrcp.pop %v1085
        %v1096 = vrcp.pop %v1088
        %v1097 = vrcp.pop %v1091
        %v1098 = vrcp.pop %v1094
        %v1099 = vmul.f32 %v1076, %v1095
        %v1100 = vmul.f32 %v1078, %v1096
        %v1101 = vmul.f32 %v1080, %v1097
        %v1102 = vmul.f32 %v1082, %v1098
        %v1104 = vsel %vm695, %v1099, 0
        %v1107 = vsel %vm695, %v1100, 0
        %v1110 = vsel %vm695, %v1101, 0
        %v1113 = vsel %vm695, %v1102, 0
        %1115 = vmatpush.msra.mxu0 0.0
        %1116 = vmatpush.msra.mxu0 0.0
        %1117 = vmatpush.msra.mxu0 0.0
        %1118 = vmatpush.msra.mxu0 0.0
        %1119 = vmatpush.msra.mxu0 0.0
        %1120 = vmatpush.msra.mxu0 0.0
        %1121 = vmatpush.msra.mxu0 0.0
        %1122 = vmatpush.msra.mxu0 0.0
        %1123 = vmatpush.msra.mxu0 0.0
        %1124 = vmatpush.msra.mxu0 0.0
        %1125 = vmatpush.msra.mxu0 0.0
        %1126 = vmatpush.msra.mxu0 0.0
        %1127 = vmatpush.msra.mxu0 %v1000
        %1128 = vmatpush.msra.mxu0 %v997
        %1129 = vmatpush.msra.mxu0 %v994
        %1130 = vmatpush.msra.mxu0 %v991
        %1131 = vmatmul.f32.gmra.mxu0 %v1104
        %v1132 = vpop.f32.mrf.mxu0
        %v1133 = vadd.f32 0.0, %v1132
        %1134 = vmatmul.f32.gmra.mxu0 %v1107
        %v1135 = vpop.f32.mrf.mxu0
        %v1136 = vadd.f32 0.0, %v1135
        %1137 = vmatmul.f32.gmra.mxu0 %v1110
        %v1138 = vpop.f32.mrf.mxu0
        %v1139 = vadd.f32 0.0, %v1138
        %1140 = vmatmul.f32.gmra.mxu0 %v1113
        %v1141 = vpop.f32.mrf.mxu0
        %v1142 = vadd.f32 0.0, %v1141
        %1143 = vdwg.mxu0
        %v1145 = vsel %vm522, %v1139, 0
        %v1148 = vsel %vm522, %v1142, 0
        %1150 = vmatpush.xpose.msra.mxu0 0.0
        %1151 = vmatpush.xpose.msra.mxu0 0.0
        %1152 = vmatpush.xpose.msra.mxu0 0.0
        %1153 = vmatpush.xpose.msra.mxu0 0.0
        %1154 = vmatpush.xpose.msra.mxu0 0.0
        %1155 = vmatpush.xpose.msra.mxu0 0.0
        %1156 = vmatpush.xpose.msra.mxu0 0.0
        %1157 = vmatpush.xpose.msra.mxu0 0.0
        %1158 = vmatpush.xpose.msra.mxu0 0.0
        %1159 = vmatpush.xpose.msra.mxu0 0.0
        %1160 = vmatpush.xpose.msra.mxu0 0.0
        %1161 = vmatpush.xpose.msra.mxu0 0.0
        %1162 = vmatpush.xpose.msra.mxu0 0.0
        %1163 = vmatpush.xpose.msra.mxu0 0.0
        %1164 = vmatpush.xpose.msra.mxu0 %v1148
        %1165 = vmatpush.xpose.msra.mxu0 %v1145
        %1166 = vmatmul.f32.gmra.mxu0 %v782
        %v1167 = vpop.f32.mrf.mxu0
        %v1168 = vadd.f32 0.0, %v1167
        %1169 = vmatmul.f32.gmra.mxu0 %v785
        %v1170 = vpop.f32.mrf.mxu0
        %v1171 = vadd.f32 0.0, %v1170
        %1172 = vmatmul.f32.gmra.mxu0 %v788
        %v1173 = vpop.f32.mrf.mxu0
        %v1174 = vadd.f32 0.0, %v1173
        %1175 = vmatmul.f32.gmra.mxu0 %v791
        %v1176 = vpop.f32.mrf.mxu0
        %v1177 = vadd.f32 0.0, %v1176
        %1178 = vdwg.mxu0
        %v1180 = vsel %vm522, %v1133, 0
        %v1183 = vsel %vm522, %v1136, 0
        %1185 = vmatpush.xpose.msra.mxu0 0.0
        %1186 = vmatpush.xpose.msra.mxu0 0.0
        %1187 = vmatpush.xpose.msra.mxu0 0.0
        %1188 = vmatpush.xpose.msra.mxu0 0.0
        %1189 = vmatpush.xpose.msra.mxu0 0.0
        %1190 = vmatpush.xpose.msra.mxu0 0.0
        %1191 = vmatpush.xpose.msra.mxu0 0.0
        %1192 = vmatpush.xpose.msra.mxu0 0.0
        %1193 = vmatpush.xpose.msra.mxu0 0.0
        %1194 = vmatpush.xpose.msra.mxu0 0.0
        %1195 = vmatpush.xpose.msra.mxu0 0.0
        %1196 = vmatpush.xpose.msra.mxu0 0.0
        %1197 = vmatpush.xpose.msra.mxu0 0.0
        %1198 = vmatpush.xpose.msra.mxu0 0.0
        %1199 = vmatpush.xpose.msra.mxu0 %v1183
        %1200 = vmatpush.xpose.msra.mxu0 %v1180
        %1201 = vmatmul.f32.gmra.mxu0 %v829
        %v1202 = vpop.f32.mrf.mxu0
        %v1203 = vadd.f32 %v1168, %v1202
        %1204 = vmatmul.f32.gmra.mxu0 %v832
        %v1205 = vpop.f32.mrf.mxu0
        %v1206 = vadd.f32 %v1171, %v1205
        %1207 = vmatmul.f32.gmra.mxu0 %v835
        %v1208 = vpop.f32.mrf.mxu0
        %v1209 = vadd.f32 %v1174, %v1208
        %1210 = vmatmul.f32.gmra.mxu0 %v838
        %v1211 = vpop.f32.mrf.mxu0
        %v1212 = vadd.f32 %v1177, %v1211
        %1213 = vdwg.mxu0
        %v1214 = vadd.f32 %v875, %v1203
        %v1215 = vadd.f32 %v876, %v1206
        %v1216 = vadd.f32 %v877, %v1209
        %v1217 = vadd.f32 %v878, %v1212
        %v1218 = vld [vmem:[%s3] sm:$0xff]
        %v1219 = vld [vmem:[%s4] sm:$0xff]
        %1221 = vset.pattern.permute.xlu0 0
        %1222 = vperm.xlu0 %1221, %v1219
        %v1223 = vpop.permute.xlu0 %1222
        %v1226 = vsel %vm695, %v1218, 0
        %1228 = vmatpush.msra.mxu0 0.0
        %1229 = vmatpush.msra.mxu0 0.0
        %1230 = vmatpush.msra.mxu0 0.0
        %1231 = vmatpush.msra.mxu0 0.0
        %1232 = vmatpush.msra.mxu0 0.0
        %1233 = vmatpush.msra.mxu0 0.0
        %1234 = vmatpush.msra.mxu0 0.0
        %1235 = vmatpush.msra.mxu0 0.0
        %1236 = vmatpush.msra.mxu0 0.0
        %1237 = vmatpush.msra.mxu0 0.0
        %1238 = vmatpush.msra.mxu0 0.0
        %1239 = vmatpush.msra.mxu0 0.0
        %1240 = vmatpush.msra.mxu0 %v1217
        %1241 = vmatpush.msra.mxu0 %v1216
        %1242 = vmatpush.msra.mxu0 %v1215
        %1243 = vmatpush.msra.mxu0 %v1214
        %1244 = vmatmul.f32.gmra.mxu0 %v1226
        %v1245 = vpop.f32.mrf.mxu0
        %v1246 = vadd.f32 %v1223, %v1245
        %1247 = vdwg.mxu0
        %v1248 = vld [vmem:[#allocation2] sm:$0xff]
        %v1249 = vld [vmem:[#allocation2 + $0x8] sm:$0xff]
        %v1250 = vld [vmem:[%s6] sm:$0x1]
        %v1252 = vperm.slane %v1250, 0
        %v1255 = vsel %vm522, %v1246, 0
        %1257 = vmatpush.msra.mxu0 0.0
        %1258 = vmatpush.msra.mxu0 0.0
        %1259 = vmatpush.msra.mxu0 0.0
        %1260 = vmatpush.msra.mxu0 0.0
        %1261 = vmatpush.msra.mxu0 0.0
        %1262 = vmatpush.msra.mxu0 0.0
        %1263 = vmatpush.msra.mxu0 0.0
        %1264 = vmatpush.msra.mxu0 0.0
        %1265 = vmatpush.msra.mxu0 0.0
        %1266 = vmatpush.msra.mxu0 0.0
        %1267 = vmatpush.msra.mxu0 0.0
        %1268 = vmatpush.msra.mxu0 0.0
        %1269 = vmatpush.msra.mxu0 0.0
        %1270 = vmatpush.msra.mxu0 0.0
        %1271 = vmatpush.msra.mxu0 %v1249
        %1272 = vmatpush.msra.mxu0 %v1248
        %1273 = vmatmul.f32.gmra.mxu0 %v1255
        %v1274 = vpop.f32.mrf.mxu0
        %v1275 = vadd.f32 %v1252, %v1274
        %1276 = vdwg.mxu0
        %s1277 = scalar_lea.vmem [#allocation2], 16
        %v1278 = vld [vmem:[%s1277] sm:$0xff]
        %v1279 = vld [vmem:[%s1277 + $0x8] sm:$0xff]
        %s1280 = scalar_lea.vmem %s6, 1
        %v1281 = vld [vmem:[%s1280] sm:$0x1]
        %v1283 = vperm.slane %v1281, 0
        %1285 = vmatpush.msra.mxu0 0.0
        %1286 = vmatpush.msra.mxu0 0.0
        %1287 = vmatpush.msra.mxu0 0.0
        %1288 = vmatpush.msra.mxu0 0.0
        %1289 = vmatpush.msra.mxu0 0.0
        %1290 = vmatpush.msra.mxu0 0.0
        %1291 = vmatpush.msra.mxu0 0.0
        %1292 = vmatpush.msra.mxu0 0.0
        %1293 = vmatpush.msra.mxu0 0.0
        %1294 = vmatpush.msra.mxu0 0.0
        %1295 = vmatpush.msra.mxu0 0.0
        %1296 = vmatpush.msra.mxu0 0.0
        %1297 = vmatpush.msra.mxu0 0.0
        %1298 = vmatpush.msra.mxu0 0.0
        %1299 = vmatpush.msra.mxu0 %v1279
        %1300 = vmatpush.msra.mxu0 %v1278
        %1301 = vmatmul.f32.gmra.mxu0 %v1255
        %v1302 = vpop.f32.mrf.mxu0
        %v1303 = vadd.f32 %v1283, %v1302
        %1304 = vdwg.mxu0
        %s1305 = scalar_lea.vmem [#allocation2], 32
        %v1306 = vld [vmem:[%s1305] sm:$0xff]
        %v1307 = vld [vmem:[%s1305 + $0x8] sm:$0xff]
        %s1308 = scalar_lea.vmem %s6, 2
        %v1309 = vld [vmem:[%s1308] sm:$0x1]
        %v1311 = vperm.slane %v1309, 0
        %1313 = vmatpush.msra.mxu0 0.0
        %1314 = vmatpush.msra.mxu0 0.0
        %1315 = vmatpush.msra.mxu0 0.0
        %1316 = vmatpush.msra.mxu0 0.0
        %1317 = vmatpush.msra.mxu0 0.0
        %1318 = vmatpush.msra.mxu0 0.0
        %1319 = vmatpush.msra.mxu0 0.0
        %1320 = vmatpush.msra.mxu0 0.0
        %1321 = vmatpush.msra.mxu0 0.0
        %1322 = vmatpush.msra.mxu0 0.0
        %1323 = vmatpush.msra.mxu0 0.0
        %1324 = vmatpush.msra.mxu0 0.0
        %1325 = vmatpush.msra.mxu0 0.0
        %1326 = vmatpush.msra.mxu0 0.0
        %1327 = vmatpush.msra.mxu0 %v1307
        %1328 = vmatpush.msra.mxu0 %v1306
        %1329 = vmatmul.f32.gmra.mxu0 %v1255
        %v1330 = vpop.f32.mrf.mxu0
        %v1331 = vadd.f32 %v1311, %v1330
        %1332 = vdwg.mxu0
        %v1334 = vsel %vm522, %v1275, 0
        %v1337 = vsel %vm522, %v1303, 0
        %1339 = vmatpush.xpose.msra.mxu0 0.0
        %1340 = vmatpush.xpose.msra.mxu0 0.0
        %1341 = vmatpush.xpose.msra.mxu0 0.0
        %1342 = vmatpush.xpose.msra.mxu0 0.0
        %1343 = vmatpush.xpose.msra.mxu0 0.0
        %1344 = vmatpush.xpose.msra.mxu0 0.0
        %1345 = vmatpush.xpose.msra.mxu0 0.0
        %1346 = vmatpush.xpose.msra.mxu0 0.0
        %1347 = vmatpush.xpose.msra.mxu0 0.0
        %1348 = vmatpush.xpose.msra.mxu0 0.0
        %1349 = vmatpush.xpose.msra.mxu0 0.0
        %1350 = vmatpush.xpose.msra.mxu0 0.0
        %1351 = vmatpush.xpose.msra.mxu0 0.0
        %1352 = vmatpush.xpose.msra.mxu0 0.0
        %1353 = vmatpush.xpose.msra.mxu0 0.0
        %1354 = vmatpush.xpose.msra.mxu0 %v1337
        %1355 = vmatmul.f32.gmra.mxu0 %v1334
        %v1356 = vpop.f32.mrf.mxu0
        %v1357 = vadd.f32 0.0, %v1356
        %1358 = vdwg.mxu0
        %v1359 = vmul.f32 %v1357, 0.25
        %vm1360 = vcmask 64512
        %v1361 = vsel %vm1360, %v1359, -inf
        %1362 = vmax.xlane.f32.xlu0 %v1361
        %v1363 = vpop.xlane.xlu0 %1362
        %v1364 = vsub.f32 %v1359, %v1363
        %v1365 = vmul.f32 %v1364, 1.442695
        %v1366 = vpow.pop %v1365
        %v1367 = vsel %vm1360, %v1366, 0.0
        %1368 = vadd.xlane.f32.xlu0 %v1367
        %v1369 = vpop.xlane.xlu0 %1368
        %v1370 = vrcp.pop %v1369
        %v1371 = vmul.f32 %v1366, %v1370
        %v1373 = vsel %vm1360, %v1371, 0
        %1375 = vmatpush.msra.mxu0 0.0
        %1376 = vmatpush.msra.mxu0 0.0
        %1377 = vmatpush.msra.mxu0 0.0
        %1378 = vmatpush.msra.mxu0 0.0
        %1379 = vmatpush.msra.mxu0 0.0
        %1380 = vmatpush.msra.mxu0 0.0
        %1381 = vmatpush.msra.mxu0 0.0
        %1382 = vmatpush.msra.mxu0 0.0
        %1383 = vmatpush.msra.mxu0 0.0
        %1384 = vmatpush.msra.mxu0 0.0
        %1385 = vmatpush.msra.mxu0 0.0
        %1386 = vmatpush.msra.mxu0 0.0
        %1387 = vmatpush.msra.mxu0 0.0
        %1388 = vmatpush.msra.mxu0 0.0
        %1389 = vmatpush.msra.mxu0 0.0
        %1390 = vmatpush.msra.mxu0 %v1331
        %1391 = vmatmul.f32.gmra.mxu0 %v1373
        %v1392 = vpop.f32.mrf.mxu0
        %v1393 = vadd.f32 0.0, %v1392
        %1394 = vdwg.mxu0
        %v1396 = vsel %vm522, %v511, 0
        %v1399 = vsel %vm522, %v1393, 0
        %1401 = vmatpush.xpose.msra.mxu0 0.0
        %1402 = vmatpush.xpose.msra.mxu0 0.0
        %1403 = vmatpush.xpose.msra.mxu0 0.0
        %1404 = vmatpush.xpose.msra.mxu0 0.0
        %1405 = vmatpush.xpose.msra.mxu0 0.0
        %1406 = vmatpush.xpose.msra.mxu0 0.0
        %1407 = vmatpush.xpose.msra.mxu0 0.0
        %1408 = vmatpush.xpose.msra.mxu0 0.0
        %1409 = vmatpush.xpose.msra.mxu0 0.0
        %1410 = vmatpush.xpose.msra.mxu0 0.0
        %1411 = vmatpush.xpose.msra.mxu0 0.0
        %1412 = vmatpush.xpose.msra.mxu0 0.0
        %1413 = vmatpush.xpose.msra.mxu0 0.0
        %1414 = vmatpush.xpose.msra.mxu0 0.0
        %1415 = vmatpush.xpose.msra.mxu0 0.0
        %1416 = vmatpush.xpose.msra.mxu0 %v1399
        %1417 = vmatmul.f32.gmra.mxu0 %v1396
        %v1418 = vpop.f32.mrf.mxu0
        %v1419 = vadd.f32 0.0, %v1418
        %1420 = vdwg.mxu0
        %v1422 = vsel %vm522, %v515, 0
        %1424 = vmatpush.xpose.msra.mxu0 0.0
        %1425 = vmatpush.xpose.msra.mxu0 0.0
        %1426 = vmatpush.xpose.msra.mxu0 0.0
        %1427 = vmatpush.xpose.msra.mxu0 0.0
        %1428 = vmatpush.xpose.msra.mxu0 0.0
        %1429 = vmatpush.xpose.msra.mxu0 0.0
        %1430 = vmatpush.xpose.msra.mxu0 0.0
        %1431 = vmatpush.xpose.msra.mxu0 0.0
        %1432 = vmatpush.xpose.msra.mxu0 0.0
        %1433 = vmatpush.xpose.msra.mxu0 0.0
        %1434 = vmatpush.xpose.msra.mxu0 0.0
        %1435 = vmatpush.xpose.msra.mxu0 0.0
        %1436 = vmatpush.xpose.msra.mxu0 0.0
        %1437 = vmatpush.xpose.msra.mxu0 0.0
        %1438 = vmatpush.xpose.msra.mxu0 0.0
        %1439 = vmatpush.xpose.msra.mxu0 %v1399
        %1440 = vmatmul.f32.gmra.mxu0 %v1422
        %v1441 = vpop.f32.mrf.mxu0
        %v1442 = vadd.f32 0.0, %v1441
        %1443 = vdwg.mxu0
        %1445 = vrot.lane.b32.xlu0 %v1442, 8
        %v1446 = vpop.permute.xlu0 %1445
        %v1448 = vsel %vm1360, %v1419, %v1446
        %v1449 = vadd.f32 %v1246, %v1448
        %s1450 = scalar_lea.vmem [#allocation2], 48
        %v1451 = vld [vmem:[%s1450] sm:$0xff]
        %v1452 = vld [vmem:[%s1450 + $0x8] sm:$0xff]
        %s1453 = scalar_lea.vmem %s6, 3
        %v1454 = vld [vmem:[%s1453] sm:$0x1]
        %v1456 = vperm.slane %v1454, 0
        %v1459 = vsel %vm522, %v1449, 0
        %1461 = vmatpush.msra.mxu0 0.0
        %1462 = vmatpush.msra.mxu0 0.0
        %1463 = vmatpush.msra.mxu0 0.0
        %1464 = vmatpush.msra.mxu0 0.0
        %1465 = vmatpush.msra.mxu0 0.0
        %1466 = vmatpush.msra.mxu0 0.0
        %1467 = vmatpush.msra.mxu0 0.0
        %1468 = vmatpush.msra.mxu0 0.0
        %1469 = vmatpush.msra.mxu0 0.0
        %1470 = vmatpush.msra.mxu0 0.0
        %1471 = vmatpush.msra.mxu0 0.0
        %1472 = vmatpush.msra.mxu0 0.0
        %1473 = vmatpush.msra.mxu0 0.0
        %1474 = vmatpush.msra.mxu0 0.0
        %1475 = vmatpush.msra.mxu0 %v1452
        %1476 = vmatpush.msra.mxu0 %v1451
        %1477 = vmatmul.f32.gmra.mxu0 %v1459
        %v1478 = vpop.f32.mrf.mxu0
        %v1479 = vadd.f32 %v1456, %v1478
        %1480 = vdwg.mxu0
        %s1481 = scalar_lea.vmem [#allocation2], 64
        %v1482 = vld [vmem:[%s1481] sm:$0xff]
        %v1483 = vld [vmem:[%s1481 + $0x8] sm:$0xff]
        %s1484 = scalar_lea.vmem %s6, 4
        %v1485 = vld [vmem:[%s1484] sm:$0x1]
        %v1487 = vperm.slane %v1485, 0
        %1489 = vmatpush.msra.mxu0 0.0
        %1490 = vmatpush.msra.mxu0 0.0
        %1491 = vmatpush.msra.mxu0 0.0
        %1492 = vmatpush.msra.mxu0 0.0
        %1493 = vmatpush.msra.mxu0 0.0
        %1494 = vmatpush.msra.mxu0 0.0
        %1495 = vmatpush.msra.mxu0 0.0
        %1496 = vmatpush.msra.mxu0 0.0
        %1497 = vmatpush.msra.mxu0 0.0
        %1498 = vmatpush.msra.mxu0 0.0
        %1499 = vmatpush.msra.mxu0 0.0
        %1500 = vmatpush.msra.mxu0 0.0
        %1501 = vmatpush.msra.mxu0 0.0
        %1502 = vmatpush.msra.mxu0 0.0
        %1503 = vmatpush.msra.mxu0 %v1483
        %1504 = vmatpush.msra.mxu0 %v1482
        %1505 = vmatmul.f32.gmra.mxu0 %v1459
        %v1506 = vpop.f32.mrf.mxu0
        %v1507 = vadd.f32 %v1487, %v1506
        %1508 = vdwg.mxu0
        %s1509 = scalar_lea.vmem [#allocation2], 80
        %v1510 = vld [vmem:[%s1509] sm:$0xff]
        %v1511 = vld [vmem:[%s1509 + $0x8] sm:$0xff]
        %s1512 = scalar_lea.vmem %s6, 5
        %v1513 = vld [vmem:[%s1512] sm:$0x1]
        %v1515 = vperm.slane %v1513, 0
        %1517 = vmatpush.msra.mxu0 0.0
        %1518 = vmatpush.msra.mxu0 0.0
        %1519 = vmatpush.msra.mxu0 0.0
        %1520 = vmatpush.msra.mxu0 0.0
        %1521 = vmatpush.msra.mxu0 0.0
        %1522 = vmatpush.msra.mxu0 0.0
        %1523 = vmatpush.msra.mxu0 0.0
        %1524 = vmatpush.msra.mxu0 0.0
        %1525 = vmatpush.msra.mxu0 0.0
        %1526 = vmatpush.msra.mxu0 0.0
        %1527 = vmatpush.msra.mxu0 0.0
        %1528 = vmatpush.msra.mxu0 0.0
        %1529 = vmatpush.msra.mxu0 0.0
        %1530 = vmatpush.msra.mxu0 0.0
        %1531 = vmatpush.msra.mxu0 %v1511
        %1532 = vmatpush.msra.mxu0 %v1510
        %1533 = vmatmul.f32.gmra.mxu0 %v1459
        %v1534 = vpop.f32.mrf.mxu0
        %v1535 = vadd.f32 %v1515, %v1534
        %1536 = vdwg.mxu0
        %v1538 = vsel %vm522, %v1479, 0
        %v1541 = vsel %vm522, %v1507, 0
        %1543 = vmatpush.xpose.msra.mxu0 0.0
        %1544 = vmatpush.xpose.msra.mxu0 0.0
        %1545 = vmatpush.xpose.msra.mxu0 0.0
        %1546 = vmatpush.xpose.msra.mxu0 0.0
        %1547 = vmatpush.xpose.msra.mxu0 0.0
        %1548 = vmatpush.xpose.msra.mxu0 0.0
        %1549 = vmatpush.xpose.msra.mxu0 0.0
        %1550 = vmatpush.xpose.msra.mxu0 0.0
        %1551 = vmatpush.xpose.msra.mxu0 0.0
        %1552 = vmatpush.xpose.msra.mxu0 0.0
        %1553 = vmatpush.xpose.msra.mxu0 0.0
        %1554 = vmatpush.xpose.msra.mxu0 0.0
        %1555 = vmatpush.xpose.msra.mxu0 0.0
        %1556 = vmatpush.xpose.msra.mxu0 0.0
        %1557 = vmatpush.xpose.msra.mxu0 0.0
        %1558 = vmatpush.xpose.msra.mxu0 %v1541
        %1559 = vmatmul.f32.gmra.mxu0 %v1538
        %v1560 = vpop.f32.mrf.mxu0
        %v1561 = vadd.f32 0.0, %v1560
        %1562 = vdwg.mxu0
        %v1563 = vmul.f32 %v1561, 0.25
        %v1564 = vsel %vm1360, %v1563, -inf
        %1565 = vmax.xlane.f32.xlu0 %v1564
        %v1566 = vpop.xlane.xlu0 %1565
        %v1567 = vsub.f32 %v1563, %v1566
        %v1568 = vmul.f32 %v1567, 1.442695
        %v1569 = vpow.pop %v1568
        %v1570 = vsel %vm1360, %v1569, 0.0
        %1571 = vadd.xlane.f32.xlu0 %v1570
        %v1572 = vpop.xlane.xlu0 %1571
        %v1573 = vrcp.pop %v1572
        %v1574 = vmul.f32 %v1569, %v1573
        %v1576 = vsel %vm1360, %v1574, 0
        %1578 = vmatpush.msra.mxu0 0.0
        %1579 = vmatpush.msra.mxu0 0.0
        %1580 = vmatpush.msra.mxu0 0.0
        %1581 = vmatpush.msra.mxu0 0.0
        %1582 = vmatpush.msra.mxu0 0.0
        %1583 = vmatpush.msra.mxu0 0.0
        %1584 = vmatpush.msra.mxu0 0.0
        %1585 = vmatpush.msra.mxu0 0.0
        %1586 = vmatpush.msra.mxu0 0.0
        %1587 = vmatpush.msra.mxu0 0.0
        %1588 = vmatpush.msra.mxu0 0.0
        %1589 = vmatpush.msra.mxu0 0.0
        %1590 = vmatpush.msra.mxu0 0.0
        %1591 = vmatpush.msra.mxu0 0.0
        %1592 = vmatpush.msra.mxu0 0.0
        %1593 = vmatpush.msra.mxu0 %v1535
        %1594 = vmatmul.f32.gmra.mxu0 %v1576
        %v1595 = vpop.f32.mrf.mxu0
        %v1596 = vadd.f32 0.0, %v1595
        %1597 = vdwg.mxu0
        %v1599 = vsel %vm522, %v1596, 0
        %1601 = vmatpush.xpose.msra.mxu0 0.0
        %1602 = vmatpush.xpose.msra.mxu0 0.0
        %1603 = vmatpush.xpose.msra.mxu0 0.0
        %1604 = vmatpush.xpose.msra.mxu0 0.0
        %1605 = vmatpush.xpose.msra.mxu0 0.0
        %1606 = vmatpush.xpose.msra.mxu0 0.0
        %1607 = vmatpush.xpose.msra.mxu0 0.0
        %1608 = vmatpush.xpose.msra.mxu0 0.0
        %1609 = vmatpush.xpose.msra.mxu0 0.0
        %1610 = vmatpush.xpose.msra.mxu0 0.0
        %1611 = vmatpush.xpose.msra.mxu0 0.0
        %1612 = vmatpush.xpose.msra.mxu0 0.0
        %1613 = vmatpush.xpose.msra.mxu0 0.0
        %1614 = vmatpush.xpose.msra.mxu0 0.0
        %1615 = vmatpush.xpose.msra.mxu0 0.0
        %1616 = vmatpush.xpose.msra.mxu0 %v1599
        %1617 = vmatmul.f32.gmra.mxu0 %v1396
        %v1618 = vpop.f32.mrf.mxu0
        %v1619 = vadd.f32 0.0, %v1618
        %1620 = vdwg.mxu0
        %1621 = vmatpush.xpose.msra.mxu0 0.0
        %1622 = vmatpush.xpose.msra.mxu0 0.0
        %1623 = vmatpush.xpose.msra.mxu0 0.0
        %1624 = vmatpush.xpose.msra.mxu0 0.0
        %1625 = vmatpush.xpose.msra.mxu0 0.0
        %1626 = vmatpush.xpose.msra.mxu0 0.0
        %1627 = vmatpush.xpose.msra.mxu0 0.0
        %1628 = vmatpush.xpose.msra.mxu0 0.0
        %1629 = vmatpush.xpose.msra.mxu0 0.0
        %1630 = vmatpush.xpose.msra.mxu0 0.0
        %1631 = vmatpush.xpose.msra.mxu0 0.0
        %1632 = vmatpush.xpose.msra.mxu0 0.0
        %1633 = vmatpush.xpose.msra.mxu0 0.0
        %1634 = vmatpush.xpose.msra.mxu0 0.0
        %1635 = vmatpush.xpose.msra.mxu0 0.0
        %1636 = vmatpush.xpose.msra.mxu0 %v1599
        %1637 = vmatmul.f32.gmra.mxu0 %v1422
        %v1638 = vpop.f32.mrf.mxu0
        %v1639 = vadd.f32 0.0, %v1638
        %1640 = vdwg.mxu0
        %1642 = vrot.lane.b32.xlu0 %v1639, 8
        %v1643 = vpop.permute.xlu0 %1642
        %v1645 = vsel %vm1360, %v1619, %v1643
        %v1646 = vadd.f32 %v1449, %v1645
        %v1647 = vld [vmem:[%s7] sm:$0xf]
        %v1648 = vld [vmem:[%s8] sm:$0xf]
        %1650 = vset.pattern.permute.xlu0 0
        %1651 = vperm.xlu0 %1650, %v1648
        %v1652 = vpop.permute.xlu0 %1651
        %v1655 = vsel %vm1360, %v1647, 0
        %1657 = vmatpush.msra.mxu0 0.0
        %1658 = vmatpush.msra.mxu0 0.0
        %1659 = vmatpush.msra.mxu0 0.0
        %1660 = vmatpush.msra.mxu0 0.0
        %1661 = vmatpush.msra.mxu0 0.0
        %1662 = vmatpush.msra.mxu0 0.0
        %1663 = vmatpush.msra.mxu0 0.0
        %1664 = vmatpush.msra.mxu0 0.0
        %1665 = vmatpush.msra.mxu0 0.0
        %1666 = vmatpush.msra.mxu0 0.0
        %1667 = vmatpush.msra.mxu0 0.0
        %1668 = vmatpush.msra.mxu0 0.0
        %1669 = vmatpush.msra.mxu0 0.0
        %1670 = vmatpush.msra.mxu0 0.0
        %1671 = vmatpush.msra.mxu0 0.0
        %1672 = vmatpush.msra.mxu0 %v1646
        %1673 = vmatmul.f32.gmra.mxu0 %v1655
        %v1674 = vpop.f32.mrf.mxu0
        %v1675 = vadd.f32 %v1652, %v1674
        %1676 = vdwg.mxu0
        %v1677 = vld [vmem:[#allocation4] sm:$0xf]
        %v1678 = vld [vmem:[%s10] sm:$0x1]
        %v1680 = vperm.slane %v1678, 0
        %1682 = vxpose.xlu0.b32.start [1/16] %v1675, 128
        %1683 = vxpose.xlu0.b32.cont [2/16] 0.0, 128
        %1684 = vxpose.xlu0.b32.cont [3/16] 0.0, 128
        %1685 = vxpose.xlu0.b32.cont [4/16] 0.0, 128
        %1686 = vxpose.xlu0.b32.cont [5/16] 0.0, 128
        %1687 = vxpose.xlu0.b32.cont [6/16] 0.0, 128
        %1688 = vxpose.xlu0.b32.cont [7/16] 0.0, 128
        %1689 = vxpose.xlu0.b32.cont [8/16] 0.0, 128
        %1690 = vxpose.xlu0.b32.cont [9/16] 0.0, 128
        %1691 = vxpose.xlu0.b32.cont [10/16] 0.0, 128
        %1692 = vxpose.xlu0.b32.cont [11/16] 0.0, 128
        %1693 = vxpose.xlu0.b32.cont [12/16] 0.0, 128
        %1694 = vxpose.xlu0.b32.cont [13/16] 0.0, 128
        %1695 = vxpose.xlu0.b32.cont [14/16] 0.0, 128
        %1696 = vxpose.xlu0.b32.cont [15/16] 0.0, 128
        %1697 = vxpose.xlu0.b32.end [16/16] 0.0, 128
        %v1698 = vpop.trf.xlu0
        %v1699 = vpop.trf.xlu0
        %v1700 = vpop.trf.xlu0
        %v1701 = vpop.trf.xlu0
        %v1702 = vpop.trf.xlu0
        %v1703 = vpop.trf.xlu0
        %v1704 = vpop.trf.xlu0
        %v1705 = vpop.trf.xlu0
        %v1706 = vpop.trf.xlu0
        %v1707 = vpop.trf.xlu0
        %v1708 = vpop.trf.xlu0
        %v1709 = vpop.trf.xlu0
        %v1710 = vpop.trf.xlu0
        %v1711 = vpop.trf.xlu0
        %v1712 = vpop.trf.xlu0
        %v1713 = vpop.trf.xlu0
        %vm1714 = vcmask 31744
        %v1716 = vsel %vm1714, %v1698, 0
        %v1719 = vsel %vm1714, %v1699, 0
        %vm1721 = vcmask 1043456
        %v1723 = vsel %vm1721, %v1677, 0
        %1725 = vmatpush.msra.mxu0 0.0
        %1726 = vmatpush.msra.mxu0 0.0
        %1727 = vmatpush.msra.mxu0 0.0
        %1728 = vmatpush.msra.mxu0 0.0
        %1729 = vmatpush.msra.mxu0 0.0
        %1730 = vmatpush.msra.mxu0 0.0
        %1731 = vmatpush.msra.mxu0 0.0
        %1732 = vmatpush.msra.mxu0 0.0
        %1733 = vmatpush.msra.mxu0 0.0
        %1734 = vmatpush.msra.mxu0 0.0
        %1735 = vmatpush.msra.mxu0 0.0
        %1736 = vmatpush.msra.mxu0 0.0
        %1737 = vmatpush.msra.mxu0 0.0
        %1738 = vmatpush.msra.mxu0 0.0
        %1739 = vmatpush.msra.mxu0 0.0
        %1740 = vmatpush.msra.mxu0 %v1723
        %1741 = vmatmul.f32.gmra.mxu0 %v1716
        %v1742 = vpop.f32.mrf.mxu0
        %v1743 = vadd.f32 %v1680, %v1742
        %1744 = vmatmul.f32.gmra.mxu0 %v1719
        %v1745 = vpop.f32.mrf.mxu0
        %v1746 = vadd.f32 %v1680, %v1745
        %1747 = vdwg.mxu0
        %v1748 = vmax.f32 %v1743, 0.0
        %v1749 = vmax.f32 %v1746, 0.0
        %v1750 = vld [vmem:[%s11] sm:$0xff]
        %v1751 = vld [vmem:[%s12] sm:$0x1]
        %v1753 = vperm.slane %v1751, 0
        %v1756 = vsel %vm1360, %v1748, 0
        %v1759 = vsel %vm1360, %v1749, 0
        %1761 = vmatpush.msra.mxu0 0.0
        %1762 = vmatpush.msra.mxu0 0.0
        %1763 = vmatpush.msra.mxu0 0.0
        %1764 = vmatpush.msra.mxu0 0.0
        %1765 = vmatpush.msra.mxu0 0.0
        %1766 = vmatpush.msra.mxu0 0.0
        %1767 = vmatpush.msra.mxu0 0.0
        %1768 = vmatpush.msra.mxu0 0.0
        %1769 = vmatpush.msra.mxu0 0.0
        %1770 = vmatpush.msra.mxu0 0.0
        %1771 = vmatpush.msra.mxu0 0.0
        %1772 = vmatpush.msra.mxu0 0.0
        %1773 = vmatpush.msra.mxu0 0.0
        %1774 = vmatpush.msra.mxu0 0.0
        %1775 = vmatpush.msra.mxu0 0.0
        %1776 = vmatpush.msra.mxu0 %v1750
        %1777 = vmatmul.f32.gmra.mxu0 %v1756
        %v1778 = vpop.f32.mrf.mxu0
        %v1779 = vadd.f32 %v1753, %v1778
        %1780 = vmatmul.f32.gmra.mxu0 %v1759
        %v1781 = vpop.f32.mrf.mxu0
        %v1782 = vadd.f32 %v1753, %v1781
        %1783 = vdwg.mxu0
        %v1784 = vmax.f32 %v1779, 0.0
        %v1785 = vmax.f32 %v1782, 0.0
        %v1786 = vxor.u32 %v1779, 2147483648
        %v1787 = vxor.u32 %v1782, 2147483648
        %v1788 = vmul.f32 %v1786, 1.442695
        %v1789 = vpow.pop %v1788
        %v1790 = vmul.f32 %v1787, 1.442695
        %v1791 = vpow.pop %v1790
        %v1792 = vadd.f32 %v1789, 1.0
        %v1793 = vadd.f32 %v1791, 1.0
        %v1794 = vrcp.pop %v1792
        %v1795 = vmul.f32 %v1792, %v1794
        %v1796 = vsub.f32 1.0, %v1795
        %v1797 = vmul.f32 %v1794, %v1796
        %v1798 = vadd.f32 %v1794, %v1797
        %vm1799 = vweird.f32 %v1792
        %vm1800 = vweird.f32 %v1794
        %vm1801 = vmor %vm1799, %vm1800
        %v1802 = vsel %vm1801, %v1794, %v1798
        %v1803 = vand.u32 2147483647, %v1792
        %vm1804 = vcmp.eq.f32.partialorder %v1803, 8.507059e+37
        %v1805 = vand.u32 %v1792, 2147483648
        %v1806 = vor.u32 1.1754944e-38, %v1805
        %v1807 = vsel %vm1804, %v1806, %v1802
        %v1808 = vmul.f32 1.0, %v1807
        %v1809 = vrcp.pop %v1793
        %v1810 = vmul.f32 %v1793, %v1809
        %v1811 = vsub.f32 1.0, %v1810
        %v1812 = vmul.f32 %v1809, %v1811
        %v1813 = vadd.f32 %v1809, %v1812
        %vm1814 = vweird.f32 %v1793
        %vm1815 = vweird.f32 %v1809
        %vm1816 = vmor %vm1814, %vm1815
        %v1817 = vsel %vm1816, %v1809, %v1813
        %v1818 = vand.u32 2147483647, %v1793
        %vm1819 = vcmp.eq.f32.partialorder %v1818, 8.507059e+37
        %v1820 = vand.u32 %v1793, 2147483648
        %v1821 = vor.u32 1.1754944e-38, %v1820
        %v1822 = vsel %vm1819, %v1821, %v1817
        %v1823 = vmul.f32 1.0, %v1822
        %1826 = vrot.lane.b32.xlu0 %v1808, 127
        %v1827 = vpop.permute.xlu0 %1826
        %1828 = vrot.lane.b32.xlu0 %v1823, 127
        %v1829 = vpop.permute.xlu0 %1828
        %v1832 = vmul.f32 %v1784, %v1827
        %v1833 = vmul.f32 %v1785, %v1829
        %vm1834 = vcmask 7168
        %v1835 = vsel %vm1834, %v1832, 0.0
        %v1836 = vsel %vm1834, %v1833, 0.0
        %v1837 = vadd.f32 %v1835, %v1836
        %v1838 = vrot.slane %v1837, 4
        %v1839 = vadd.f32 %v1837, %v1838
        %v1840 = vrot.slane %v1839, 2
        %v1841 = vadd.f32 %v1839, %v1840
        %v1842 = vrot.slane %v1841, 1
        %v1843 = vadd.f32 %v1841, %v1842
        %vm1844 = vcmask 15368
        %v1845 = vsel %vm1844, %v1808, 0.0
        %v1846 = vsel %vm1844, %v1823, 0.0
        %v1847 = vadd.f32 %v1845, %v1846
        %v1848 = vrot.slane %v1847, 4
        %v1849 = vadd.f32 %v1847, %v1848
        %v1850 = vrot.slane %v1849, 2
        %v1851 = vadd.f32 %v1849, %v1850
        %v1852 = vrot.slane %v1851, 1
        %v1853 = vadd.f32 %v1851, %v1852
        %1855 = vrot.lane.b32.xlu0 %v1853, 127
        %v1856 = vpop.permute.xlu0 %1855
        %v1858 = vrcp.pop %v1856
        %v1859 = vmul.f32 %v1856, %v1858
        %v1860 = vsub.f32 1.0, %v1859
        %v1861 = vmul.f32 %v1858, %v1860
        %v1862 = vadd.f32 %v1858, %v1861
        %vm1863 = vweird.f32 %v1856
        %vm1864 = vweird.f32 %v1858
        %vm1865 = vmor %vm1863, %vm1864
        %v1866 = vsel %vm1865, %v1858, %v1862
        %v1867 = vand.u32 2147483647, %v1856
        %vm1868 = vcmp.eq.f32.partialorder %v1867, 8.507059e+37
        %v1869 = vand.u32 %v1856, 2147483648
        %v1870 = vor.u32 1.1754944e-38, %v1869
        %v1871 = vsel %vm1868, %v1870, %v1866
        %v1872 = vmul.f32 %v1843, %v1871
        %s1874 = vtos %v1872
        %v1875 = vstv %s1874
        %1877 = vst [vmem:[%s470] sm:$0xff] %v1875
        %p1878 = scmp.lt.s32.totalorder %s26, 1
        %s1879 = scalar_select %p1878, %s26, 1
        %s1880 = smul.addr %s1879, 8
        %s1881 = scalar_lea.vmem %s13, %s1880
        // Predicated region
        $region81: #{maniqa_forward.1} parent=71 // pred_check
          %p1882 = pneg %p322
        $region82: #{maniqa_forward.1} parent=71 // pred_check_branch
          %1884 = sbr.rel (%p1882) target = $region84
        $region83: #{maniqa_forward.1} parent=71 // pred_region
          _
        $region84: #{maniqa_forward.1} parent=71 // pred_fallthru
          _
      $region72: #{maniqa_forward.1} parent=5 // pred_fallthru
        _
      %p1885 = scmp.le.s32.totalorder 2, %s21
      // Predicated region
      $region85: #{maniqa_forward.1} parent=5 // pred_check
        %p1886 = pneg %p1885
      $region86: #{maniqa_forward.1} parent=5 // pred_check_branch
        %1888 = sbr.rel (%p1886) target = $region88
      $region87: #{maniqa_forward.1} parent=5 // pred_region
        %s1889 = ssub.s32 %s21, 2
        // Predicated region
        $region89: #{maniqa_forward.1} parent=87 // pred_check
          %p1890 = pneg %p328
        $region90: #{maniqa_forward.1} parent=87 // pred_check_branch
          %1892 = sbr.rel (%p1890) target = $region92
        $region91: #{maniqa_forward.1} parent=87 // pred_region
          %p1893 = scmp.lt.s32.totalorder %s27, 1
          %s1894 = scalar_select %p1893, %s27, 1
          %s1895 = smul.addr %s1894, 8
          %s1896 = scalar_lea.vmem %s13, %s1895
        $region92: #{maniqa_forward.1} parent=87 // pred_fallthru
          _
      $region88: #{maniqa_forward.1} parent=5 // pred_fallthru
        _
    $region6: #{maniqa_forward.1} parent=1 // loop_footer
      %s25 = sadd.s32 1, %s21
    $region7: #{maniqa_forward.1} parent=1 // loop_footer_branch
      %20 = sbr.rel target = $region3
    $region8: #{maniqa_forward.1} parent=1 // loop_exit
      _
    %1897 = vsyncpa [#allocation3], 1
    %s1898 = scalar_lea.sflag [#allocation3], 1
    %1899 = vsyncpa %s1898, 1
    %1900 = vsyncpa [#allocation5], 1

</llo_original>
